<compile_context>
chip_gen: v7x
topology: tpu7x:2x2x1
jax: 0.10.0
libtpu: 0.0.40
codegen_flags: <defaults>
</compile_context>

<pallas_src>
import jax
import jax.numpy as jnp
from jax import lax
from jax.experimental import pallas as pl
from jax.experimental.pallas import tpu as pltpu

F32 = jnp.float32
BF16 = jnp.bfloat16   # set to jnp.float32 for exact f32 parity with torch


def _round_up(x, m):
    return (x + m - 1) // m * m


def _pad2d(x, rows, cols, dtype=F32):
    x = jnp.asarray(x, F32)
    x = jnp.pad(x, ((0, rows - x.shape[0]), (0, cols - x.shape[1])))
    return x.astype(dtype)


# ---------------------------------------------------------------------------
# One fused Pallas kernel: movie Linear + 2-layer hetero SAGE GNN + classifier
# ---------------------------------------------------------------------------
def _fused_kernel(
    x_user0_ref,    # [NU, H]  bf16 user embedding rows
    movie_x_ref,    # [NM, FP] bf16 raw movie features (zero-padded cols)
    movie_emb_ref,  # [NM, H]  f32  movie embedding rows
    wm_t_ref,       # [FP, H]  bf16 movie_lin.weight^T
    bm_ref,         # [1,  H]  f32  movie_lin.bias
    a_movie_ref,    # [NM, NU] bf16 user->movie adjacency (edge multiplicities)
    inv_deg_m_ref,  # [NM, 1]  f32  1/deg (mean aggregation), 0 for padded rows
    a_user_ref,     # [NU, NM] bf16 movie->user adjacency
    inv_deg_u_ref,  # [NU, 1]  f32
    w1l_u2m_ref, w1r_u2m_ref, b1_u2m_ref,   # per-conv lin_l^T / lin_r^T / bias
    w1l_m2u_ref, w1r_m2u_ref, b1_m2u_ref,
    w2l_u2m_ref, w2r_u2m_ref, b2_u2m_ref,
    w2l_m2u_ref, w2r_m2u_ref, b2_m2u_ref,
    su_t_ref,       # [NU, LP] bf16 one-hot^T: user endpoint per supervision edge
    sm_t_ref,       # [NM, LP] bf16 one-hot^T: movie endpoint per supervision edge
    out_ref,        # [1,  LP] f32  lane-dense predictions
):
    def mm(a, b):
        return jnp.dot(a, b, preferred_element_type=F32)

    def sage(a, inv_deg, x_src, x_dst, wl_t_ref, wr_t_ref, b_ref, relu):
        # PyG SAGEConv(aggr='mean', root_weight=True):
        #   out = lin_l(mean_{j in N(i)} x_src[j]) + lin_r(x_dst[i])
        # Two K=H dots (no concatenate copy); mean applied with f32 1/deg column.
        agg = (mm(a, x_src) * inv_deg).astype(BF16)               # [N_dst, H]
        out = mm(agg, wl_t_ref[...]) + mm(x_dst, wr_t_ref[...]) + b_ref[...]
        return jnp.maximum(out, 0.0) if relu else out

    # --- input projections ----------------------------------------------------
    x_user0 = x_user0_ref[...]                                    # bf16 [NU, H]
    x_movie0 = (mm(movie_x_ref[...], wm_t_ref[...]) + bm_ref[...]
                + movie_emb_ref[...]).astype(BF16)                # [NM, H]

    a_m, idm = a_movie_ref[...], inv_deg_m_ref[...]
    a_u, idu = a_user_ref[...], inv_deg_u_ref[...]

    # --- to_hetero GNN: layer 1 (ReLU), layer 2 (linear) -----------------------
    # NOTE: padded destination-node rows come out as relu(bias)/bias (NOT zero);
    # this is harmless because the zero adjacency / selection columns never read
    # those rows, and intermediates never leave VMEM.
    x_movie1 = sage(a_m, idm, x_user0, x_movie0,
                    w1l_u2m_ref, w1r_u2m_ref, b1_u2m_ref, True).astype(BF16)
    x_user1 = sage(a_u, idu, x_movie0, x_user0,
                   w1l_m2u_ref, w1r_m2u_ref, b1_m2u_ref, True).astype(BF16)

    x_movie2 = sage(a_m, idm, x_user1, x_movie1,
                    w2l_u2m_ref, w2r_u2m_ref, b2_u2m_ref, False).astype(BF16)
    x_user2 = sage(a_u, idu, x_movie1, x_user1,
                   w2l_m2u_ref, w2r_m2u_ref, b2_m2u_ref, False).astype(BF16)

    # --- classifier: (x_user2[u_l] * x_movie2[m_l]).sum(-1) --------------------
    # Contract the node axis directly so results land as [H, LP]; a single
    # sublane reduction then yields the lane-dense [1, LP] output (no 128x128
    # transpose on the serial critical path).
    dn = (((0,), (0,)), ((), ()))
    eu_t = lax.dot_general(x_user2, su_t_ref[...], dn,
                           preferred_element_type=F32)            # [H, LP]
    em_t = lax.dot_general(x_movie2, sm_t_ref[...], dn,
                           preferred_element_type=F32)            # [H, LP]
    out_ref[...] = jnp.sum(eu_t * em_t, axis=0, keepdims=True)    # [1, LP]


# ---------------------------------------------------------------------------
# Per-graph constants (built once per graph, reused every forward pass)
# ---------------------------------------------------------------------------
def build_graph_constants(edge_index, edge_label_index, n_users, n_movies,
                          nu_pad, nm_pad, lp):
    u, m = edge_index[0], edge_index[1]

    def adj(dst, src, n_dst, n_src, nd_pad, ns_pad):
        # Edge-multiplicity adjacency (small integers -> exact in bf16); the
        # mean-normalization uses an f32 1/deg column applied in-kernel.
        a = jnp.zeros((n_dst, n_src), F32).at[dst, src].add(1.0)
        deg = a.sum(axis=1, keepdims=True)
        inv = 1.0 / jnp.maximum(deg, 1.0)     # isolated nodes aggregate to 0 (PyG)
        return _pad2d(a, nd_pad, ns_pad, BF16), _pad2d(inv, nd_pad, 1, F32)

    # edge_index_dict after T.ToUndirected():
    #   ('user','rates','movie')     : user -> movie
    #   ('movie','rev_rates','user') : movie -> user (reversed)
    a_movie, inv_deg_m = adj(m, u, n_movies, n_users, nm_pad, nu_pad)
    a_user, inv_deg_u = adj(u, m, n_users, n_movies, nu_pad, nm_pad)

    lu, lm = edge_label_index[0], edge_label_index[1]
    # Transposed one-hot selection matrices, lane-dense along the label axis.
    # TODO(synk): at realistic L / node counts replace these dense one-hot matmuls
    #   with scalar-prefetched index gathers (PrefetchScalarGridSpec + pl.ds rows).
    su_t = _pad2d(jax.nn.one_hot(lu, nu_pad, dtype=F32).T, nu_pad, lp, BF16)
    sm_t = _pad2d(jax.nn.one_hot(lm, nm_pad, dtype=F32).T, nm_pad, lp, BF16)
    return {"a_movie": a_movie, "inv_deg_m": inv_deg_m,
            "a_user": a_user, "inv_deg_u": inv_deg_u,
            "su_t": su_t, "sm_t": sm_t}


def prepare_params(params, hidden, fp_pad):
    """bf16 transposed weights (no hidden-dim padding) + f32 biases."""
    def bias(b):
        return jnp.asarray(b, F32).reshape(1, hidden)

    def sage(p):
        w_l, w_r, b_l = p  # torch Linear weights: [out, in]
        return (jnp.asarray(w_l.T, BF16), jnp.asarray(w_r.T, BF16), bias(b_l))

    g = params["gnn"]
    return {
        "wm_t": _pad2d(params["movie_lin_w"].T, fp_pad, hidden, BF16),  # [FP, H]
        "bm": bias(params["movie_lin_b"]),
        "conv1_u2m": sage(g["conv1_u2m"]),
        "conv1_m2u": sage(g["conv1_m2u"]),
        "conv2_u2m": sage(g["conv2_u2m"]),
        "conv2_m2u": sage(g["conv2_m2u"]),
    }


def prepare_node_inputs(params, data, nu_pad, nm_pad, hidden, fp_pad):
    """Embedding gathers + padding, hoisted out of the per-call path."""
    return {
        "x_user0": _pad2d(params["user_emb"][data["user_node_id"]],
                          nu_pad, hidden, BF16),
        "movie_emb": _pad2d(params["movie_emb"][data["movie_node_id"]],
                            nm_pad, hidden, F32),
        "movie_x": _pad2d(data["movie_x"], nm_pad, fp_pad, BF16),
    }


# ---------------------------------------------------------------------------
# Forward pass
# ---------------------------------------------------------------------------
def model_forward(params_padded, node_inputs, graph, *, hidden, fp_pad,
                  nu_pad, nm_pad, lp, n_label):
    operands = (
        node_inputs["x_user0"], node_inputs["movie_x"], node_inputs["movie_emb"],
        params_padded["wm_t"], params_padded["bm"],
        graph["a_movie"], graph["inv_deg_m"], graph["a_user"], graph["inv_deg_u"],
        *params_padded["conv1_u2m"], *params_padded["conv1_m2u"],
        *params_padded["conv2_u2m"], *params_padded["conv2_m2u"],
        graph["su_t"], graph["sm_t"],
    )

    # Advisory cost estimate for the XLA scheduler.
    flops = 2 * (
        nm_pad * fp_pad * hidden                                    # movie Linear
        + 2 * (nm_pad * nu_pad * hidden + 2 * nm_pad * hidden * hidden)  # movie-dst
        + 2 * (nu_pad * nm_pad * hidden + 2 * nu_pad * hidden * hidden)  # user-dst
        + hidden * nu_pad * lp + hidden * nm_pad * lp               # classifier dots
    ) + 2 * hidden * lp
    bytes_accessed = sum(int(o.size) * o.dtype.itemsize for o in operands) + 4 * lp

    out = pl.pallas_call(
        _fused_kernel,
        out_shape=jax.ShapeDtypeStruct((1, lp), F32),
        in_specs=[pl.BlockSpec(memory_space=pltpu.MemorySpace.VMEM)] * len(operands),
        out_specs=pl.BlockSpec(memory_space=pltpu.MemorySpace.VMEM),
        compiler_params=pltpu.CompilerParams(vmem_limit_bytes=32 * 1024 * 1024),
        cost_estimate=pl.CostEstimate(
            flops=flops, transcendentals=0, bytes_accessed=bytes_accessed),
    )(*operands)
    return out[0, :n_label]


# ---------------------------------------------------------------------------
# Deterministic parameter construction
# ---------------------------------------------------------------------------
def init_params(key, n_users, n_movies, movie_feat, hidden):
    keys = jax.random.split(key, 16)
    k = iter(keys)

    def mat(shape):
        return (jax.random.normal(next(k), shape, F32) * 0.1).astype(F32)

    def sage_params():
        return (mat((hidden, hidden)), mat((hidden, hidden)), mat((hidden,)))

    return {
        "movie_lin_w": mat((hidden, movie_feat)),  # torch Linear: [out, in]
        "movie_lin_b": mat((hidden,)),
        "user_emb": mat((n_users, hidden)),
        "movie_emb": mat((n_movies, hidden)),
        "gnn": {
            "conv1_u2m": sage_params(),
            "conv1_m2u": sage_params(),
            "conv2_u2m": sage_params(),
            "conv2_m2u": sage_params(),
        },
    }


if __name__ == "__main__":
    N_USERS, N_MOVIES = 16, 12
    MOVIE_FEAT, HIDDEN = 20, 32
    N_EDGES, N_LABEL_EDGES = 40, 8

    # Hidden dim stays un-padded (32); feature dim padded 20->32; node counts
    # sublane-aligned (8); supervision edges padded to one full lane row (128)
    # so ONLY the kernel output is lane-dense.
    FP_PAD = 32
    NU_PAD = _round_up(N_USERS, 8)
    NM_PAD = _round_up(N_MOVIES, 8)
    LP = _round_up(N_LABEL_EDGES, 128)

    key = jax.random.PRNGKey(0)
    k_par, k_x, k_eu, k_em, k_lu, k_lm = jax.random.split(key, 6)

    params = init_params(k_par, N_USERS, N_MOVIES, MOVIE_FEAT, HIDDEN)

    data = {
        "user_node_id": jnp.arange(N_USERS, dtype=jnp.int32),
        "movie_node_id": jnp.arange(N_MOVIES, dtype=jnp.int32),
        "movie_x": jax.random.normal(k_x, (N_MOVIES, MOVIE_FEAT), F32),
        "edge_index_user_rates_movie": jnp.stack(
            [
                jax.random.randint(k_eu, (N_EDGES,), 0, N_USERS, jnp.int32),
                jax.random.randint(k_em, (N_EDGES,), 0, N_MOVIES, jnp.int32),
            ]
        ),
        "edge_label_index": jnp.stack(
            [
                jax.random.randint(k_lu, (N_LABEL_EDGES,), 0, N_USERS, jnp.int32),
                jax.random.randint(k_lm, (N_LABEL_EDGES,), 0, N_MOVIES, jnp.int32),
            ]
        ),
    }

    # Built once, reused for every forward pass (graph + padded params + padded inputs).
    graph = build_graph_constants(
        data["edge_index_user_rates_movie"], data["edge_label_index"],
        N_USERS, N_MOVIES, NU_PAD, NM_PAD, LP)
    params_padded = prepare_params(params, HIDDEN, FP_PAD)
    node_inputs = prepare_node_inputs(params, data, NU_PAD, NM_PAD, HIDDEN, FP_PAD)

    pred = model_forward(params_padded, node_inputs, graph,
                         hidden=HIDDEN, fp_pad=FP_PAD, nu_pad=NU_PAD,
                         nm_pad=NM_PAD, lp=LP, n_label=N_LABEL_EDGES)
    jax.block_until_ready(pred)
    assert pred.shape == (N_LABEL_EDGES,) and pred.dtype == jnp.float32
    print("KERNEL_OK")
</pallas_src>

<mosaic_0001>
module attributes {stable_mosaic.version = 11 : i64} {
  func.func @_fused_kernel(%arg0: memref<16x32xbf16, #tpu.memory_space<vmem>>, %arg1: memref<16x32xbf16, #tpu.memory_space<vmem>>, %arg2: memref<16x32xf32, #tpu.memory_space<vmem>>, %arg3: memref<32x32xbf16, #tpu.memory_space<vmem>>, %arg4: memref<1x32xf32, #tpu.memory_space<vmem>>, %arg5: memref<16x16xbf16, #tpu.memory_space<vmem>>, %arg6: memref<16x1xf32, #tpu.memory_space<vmem>>, %arg7: memref<16x16xbf16, #tpu.memory_space<vmem>>, %arg8: memref<16x1xf32, #tpu.memory_space<vmem>>, %arg9: memref<32x32xbf16, #tpu.memory_space<vmem>>, %arg10: memref<32x32xbf16, #tpu.memory_space<vmem>>, %arg11: memref<1x32xf32, #tpu.memory_space<vmem>>, %arg12: memref<32x32xbf16, #tpu.memory_space<vmem>>, %arg13: memref<32x32xbf16, #tpu.memory_space<vmem>>, %arg14: memref<1x32xf32, #tpu.memory_space<vmem>>, %arg15: memref<32x32xbf16, #tpu.memory_space<vmem>>, %arg16: memref<32x32xbf16, #tpu.memory_space<vmem>>, %arg17: memref<1x32xf32, #tpu.memory_space<vmem>>, %arg18: memref<32x32xbf16, #tpu.memory_space<vmem>>, %arg19: memref<32x32xbf16, #tpu.memory_space<vmem>>, %arg20: memref<1x32xf32, #tpu.memory_space<vmem>>, %arg21: memref<16x128xbf16, #tpu.memory_space<vmem>>, %arg22: memref<16x128xbf16, #tpu.memory_space<vmem>>, %arg23: memref<1x128xf32, #tpu.memory_space<vmem>>) attributes {dimension_semantics = [], scalar_prefetch = 0 : i64, scratch_operands = 0 : i64, tpu.core_type = #tpu.core_type<tc>} {
    %c0 = arith.constant 0 : index
    %c0_0 = arith.constant 0 : index
    %0 = vector.load %arg0[%c0, %c0_0] : memref<16x32xbf16, #tpu.memory_space<vmem>>, vector<16x32xbf16>
    %c0_1 = arith.constant 0 : index
    %c0_2 = arith.constant 0 : index
    %1 = vector.load %arg1[%c0_1, %c0_2] : memref<16x32xbf16, #tpu.memory_space<vmem>>, vector<16x32xbf16>
    %c0_3 = arith.constant 0 : index
    %c0_4 = arith.constant 0 : index
    %2 = vector.load %arg3[%c0_3, %c0_4] : memref<32x32xbf16, #tpu.memory_space<vmem>>, vector<32x32xbf16>
    %cst = arith.constant dense<0.000000e+00> : vector<16x32xf32>
    %3 = tpu.matmul %1, %2, %cst {dimension_numbers = #tpu.dot_dimension_numbers<[1], [0], [0], [1], [0, 0, 1, 1], [], []>} : vector<16x32xbf16>, vector<32x32xbf16>, vector<16x32xf32> -> vector<16x32xf32>
    %c0_5 = arith.constant 0 : index
    %c0_6 = arith.constant 0 : index
    %4 = vector.load %arg4[%c0_5, %c0_6] : memref<1x32xf32, #tpu.memory_space<vmem>>, vector<1x32xf32>
    %5 = vector.broadcast %4 : vector<1x32xf32> to vector<16x32xf32>
    %6 = arith.addf %3, %5 : vector<16x32xf32>
    %c0_7 = arith.constant 0 : index
    %c0_8 = arith.constant 0 : index
    %7 = vector.load %arg2[%c0_7, %c0_8] : memref<16x32xf32, #tpu.memory_space<vmem>>, vector<16x32xf32>
    %8 = arith.addf %6, %7 : vector<16x32xf32>
    %9 = arith.truncf %8 : vector<16x32xf32> to vector<16x32xbf16>
    %c0_9 = arith.constant 0 : index
    %c0_10 = arith.constant 0 : index
    %10 = vector.load %arg5[%c0_9, %c0_10] : memref<16x16xbf16, #tpu.memory_space<vmem>>, vector<16x16xbf16>
    %c0_11 = arith.constant 0 : index
    %c0_12 = arith.constant 0 : index
    %11 = vector.load %arg6[%c0_11, %c0_12] : memref<16x1xf32, #tpu.memory_space<vmem>>, vector<16x1xf32>
    %c0_13 = arith.constant 0 : index
    %c0_14 = arith.constant 0 : index
    %12 = vector.load %arg7[%c0_13, %c0_14] : memref<16x16xbf16, #tpu.memory_space<vmem>>, vector<16x16xbf16>
    %c0_15 = arith.constant 0 : index
    %c0_16 = arith.constant 0 : index
    %13 = vector.load %arg8[%c0_15, %c0_16] : memref<16x1xf32, #tpu.memory_space<vmem>>, vector<16x1xf32>
    %cst_17 = arith.constant dense<0.000000e+00> : vector<16x32xf32>
    %14 = tpu.matmul %10, %0, %cst_17 {dimension_numbers = #tpu.dot_dimension_numbers<[1], [0], [0], [1], [0, 0, 1, 1], [], []>} : vector<16x16xbf16>, vector<16x32xbf16>, vector<16x32xf32> -> vector<16x32xf32>
    %15 = vector.broadcast %11 : vector<16x1xf32> to vector<16x32xf32>
    %16 = arith.mulf %14, %15 : vector<16x32xf32>
    %17 = arith.truncf %16 : vector<16x32xf32> to vector<16x32xbf16>
    %c0_18 = arith.constant 0 : index
    %c0_19 = arith.constant 0 : index
    %18 = vector.load %arg9[%c0_18, %c0_19] : memref<32x32xbf16, #tpu.memory_space<vmem>>, vector<32x32xbf16>
    %cst_20 = arith.constant dense<0.000000e+00> : vector<16x32xf32>
    %19 = tpu.matmul %17, %18, %cst_20 {dimension_numbers = #tpu.dot_dimension_numbers<[1], [0], [0], [1], [0, 0, 1, 1], [], []>} : vector<16x32xbf16>, vector<32x32xbf16>, vector<16x32xf32> -> vector<16x32xf32>
    %c0_21 = arith.constant 0 : index
    %c0_22 = arith.constant 0 : index
    %20 = vector.load %arg10[%c0_21, %c0_22] : memref<32x32xbf16, #tpu.memory_space<vmem>>, vector<32x32xbf16>
    %cst_23 = arith.constant dense<0.000000e+00> : vector<16x32xf32>
    %21 = tpu.matmul %9, %20, %cst_23 {dimension_numbers = #tpu.dot_dimension_numbers<[1], [0], [0], [1], [0, 0, 1, 1], [], []>} : vector<16x32xbf16>, vector<32x32xbf16>, vector<16x32xf32> -> vector<16x32xf32>
    %22 = arith.addf %19, %21 : vector<16x32xf32>
    %c0_24 = arith.constant 0 : index
    %c0_25 = arith.constant 0 : index
    %23 = vector.load %arg11[%c0_24, %c0_25] : memref<1x32xf32, #tpu.memory_space<vmem>>, vector<1x32xf32>
    %24 = vector.broadcast %23 : vector<1x32xf32> to vector<16x32xf32>
    %25 = arith.addf %22, %24 : vector<16x32xf32>
    %cst_26 = arith.constant 0.000000e+00 : f32
    %26 = vector.broadcast %cst_26 : f32 to vector<16x32xf32>
    %27 = arith.maximumf %25, %26 : vector<16x32xf32>
    %28 = arith.truncf %27 : vector<16x32xf32> to vector<16x32xbf16>
    %cst_27 = arith.constant dense<0.000000e+00> : vector<16x32xf32>
    %29 = tpu.matmul %12, %9, %cst_27 {dimension_numbers = #tpu.dot_dimension_numbers<[1], [0], [0], [1], [0, 0, 1, 1], [], []>} : vector<16x16xbf16>, vector<16x32xbf16>, vector<16x32xf32> -> vector<16x32xf32>
    %30 = vector.broadcast %13 : vector<16x1xf32> to vector<16x32xf32>
    %31 = arith.mulf %29, %30 : vector<16x32xf32>
    %32 = arith.truncf %31 : vector<16x32xf32> to vector<16x32xbf16>
    %c0_28 = arith.constant 0 : index
    %c0_29 = arith.constant 0 : index
    %33 = vector.load %arg12[%c0_28, %c0_29] : memref<32x32xbf16, #tpu.memory_space<vmem>>, vector<32x32xbf16>
    %cst_30 = arith.constant dense<0.000000e+00> : vector<16x32xf32>
    %34 = tpu.matmul %32, %33, %cst_30 {dimension_numbers = #tpu.dot_dimension_numbers<[1], [0], [0], [1], [0, 0, 1, 1], [], []>} : vector<16x32xbf16>, vector<32x32xbf16>, vector<16x32xf32> -> vector<16x32xf32>
    %c0_31 = arith.constant 0 : index
    %c0_32 = arith.constant 0 : index
    %35 = vector.load %arg13[%c0_31, %c0_32] : memref<32x32xbf16, #tpu.memory_space<vmem>>, vector<32x32xbf16>
    %cst_33 = arith.constant dense<0.000000e+00> : vector<16x32xf32>
    %36 = tpu.matmul %0, %35, %cst_33 {dimension_numbers = #tpu.dot_dimension_numbers<[1], [0], [0], [1], [0, 0, 1, 1], [], []>} : vector<16x32xbf16>, vector<32x32xbf16>, vector<16x32xf32> -> vector<16x32xf32>
    %37 = arith.addf %34, %36 : vector<16x32xf32>
    %c0_34 = arith.constant 0 : index
    %c0_35 = arith.constant 0 : index
    %38 = vector.load %arg14[%c0_34, %c0_35] : memref<1x32xf32, #tpu.memory_space<vmem>>, vector<1x32xf32>
    %39 = vector.broadcast %38 : vector<1x32xf32> to vector<16x32xf32>
    %40 = arith.addf %37, %39 : vector<16x32xf32>
    %cst_36 = arith.constant 0.000000e+00 : f32
    %41 = vector.broadcast %cst_36 : f32 to vector<16x32xf32>
    %42 = arith.maximumf %40, %41 : vector<16x32xf32>
    %43 = arith.truncf %42 : vector<16x32xf32> to vector<16x32xbf16>
    %cst_37 = arith.constant dense<0.000000e+00> : vector<16x32xf32>
    %44 = tpu.matmul %10, %43, %cst_37 {dimension_numbers = #tpu.dot_dimension_numbers<[1], [0], [0], [1], [0, 0, 1, 1], [], []>} : vector<16x16xbf16>, vector<16x32xbf16>, vector<16x32xf32> -> vector<16x32xf32>
    %45 = vector.broadcast %11 : vector<16x1xf32> to vector<16x32xf32>
    %46 = arith.mulf %44, %45 : vector<16x32xf32>
    %47 = arith.truncf %46 : vector<16x32xf32> to vector<16x32xbf16>
    %c0_38 = arith.constant 0 : index
    %c0_39 = arith.constant 0 : index
    %48 = vector.load %arg15[%c0_38, %c0_39] : memref<32x32xbf16, #tpu.memory_space<vmem>>, vector<32x32xbf16>
    %cst_40 = arith.constant dense<0.000000e+00> : vector<16x32xf32>
    %49 = tpu.matmul %47, %48, %cst_40 {dimension_numbers = #tpu.dot_dimension_numbers<[1], [0], [0], [1], [0, 0, 1, 1], [], []>} : vector<16x32xbf16>, vector<32x32xbf16>, vector<16x32xf32> -> vector<16x32xf32>
    %c0_41 = arith.constant 0 : index
    %c0_42 = arith.constant 0 : index
    %50 = vector.load %arg16[%c0_41, %c0_42] : memref<32x32xbf16, #tpu.memory_space<vmem>>, vector<32x32xbf16>
    %cst_43 = arith.constant dense<0.000000e+00> : vector<16x32xf32>
    %51 = tpu.matmul %28, %50, %cst_43 {dimension_numbers = #tpu.dot_dimension_numbers<[1], [0], [0], [1], [0, 0, 1, 1], [], []>} : vector<16x32xbf16>, vector<32x32xbf16>, vector<16x32xf32> -> vector<16x32xf32>
    %52 = arith.addf %49, %51 : vector<16x32xf32>
    %c0_44 = arith.constant 0 : index
    %c0_45 = arith.constant 0 : index
    %53 = vector.load %arg17[%c0_44, %c0_45] : memref<1x32xf32, #tpu.memory_space<vmem>>, vector<1x32xf32>
    %54 = vector.broadcast %53 : vector<1x32xf32> to vector<16x32xf32>
    %55 = arith.addf %52, %54 : vector<16x32xf32>
    %56 = arith.truncf %55 : vector<16x32xf32> to vector<16x32xbf16>
    %cst_46 = arith.constant dense<0.000000e+00> : vector<16x32xf32>
    %57 = tpu.matmul %12, %28, %cst_46 {dimension_numbers = #tpu.dot_dimension_numbers<[1], [0], [0], [1], [0, 0, 1, 1], [], []>} : vector<16x16xbf16>, vector<16x32xbf16>, vector<16x32xf32> -> vector<16x32xf32>
    %58 = vector.broadcast %13 : vector<16x1xf32> to vector<16x32xf32>
    %59 = arith.mulf %57, %58 : vector<16x32xf32>
    %60 = arith.truncf %59 : vector<16x32xf32> to vector<16x32xbf16>
    %c0_47 = arith.constant 0 : index
    %c0_48 = arith.constant 0 : index
    %61 = vector.load %arg18[%c0_47, %c0_48] : memref<32x32xbf16, #tpu.memory_space<vmem>>, vector<32x32xbf16>
    %cst_49 = arith.constant dense<0.000000e+00> : vector<16x32xf32>
    %62 = tpu.matmul %60, %61, %cst_49 {dimension_numbers = #tpu.dot_dimension_numbers<[1], [0], [0], [1], [0, 0, 1, 1], [], []>} : vector<16x32xbf16>, vector<32x32xbf16>, vector<16x32xf32> -> vector<16x32xf32>
    %c0_50 = arith.constant 0 : index
    %c0_51 = arith.constant 0 : index
    %63 = vector.load %arg19[%c0_50, %c0_51] : memref<32x32xbf16, #tpu.memory_space<vmem>>, vector<32x32xbf16>
    %cst_52 = arith.constant dense<0.000000e+00> : vector<16x32xf32>
    %64 = tpu.matmul %43, %63, %cst_52 {dimension_numbers = #tpu.dot_dimension_numbers<[1], [0], [0], [1], [0, 0, 1, 1], [], []>} : vector<16x32xbf16>, vector<32x32xbf16>, vector<16x32xf32> -> vector<16x32xf32>
    %65 = arith.addf %62, %64 : vector<16x32xf32>
    %c0_53 = arith.constant 0 : index
    %c0_54 = arith.constant 0 : index
    %66 = vector.load %arg20[%c0_53, %c0_54] : memref<1x32xf32, #tpu.memory_space<vmem>>, vector<1x32xf32>
    %67 = vector.broadcast %66 : vector<1x32xf32> to vector<16x32xf32>
    %68 = arith.addf %65, %67 : vector<16x32xf32>
    %69 = arith.truncf %68 : vector<16x32xf32> to vector<16x32xbf16>
    %c0_55 = arith.constant 0 : index
    %c0_56 = arith.constant 0 : index
    %70 = vector.load %arg21[%c0_55, %c0_56] : memref<16x128xbf16, #tpu.memory_space<vmem>>, vector<16x128xbf16>
    %cst_57 = arith.constant dense<0.000000e+00> : vector<32x128xf32>
    %71 = tpu.matmul %69, %70, %cst_57 {dimension_numbers = #tpu.dot_dimension_numbers<[0], [0], [1], [1], [0, 1, 1, 1], [], []>} : vector<16x32xbf16>, vector<16x128xbf16>, vector<32x128xf32> -> vector<32x128xf32>
    %c0_58 = arith.constant 0 : index
    %c0_59 = arith.constant 0 : index
    %72 = vector.load %arg22[%c0_58, %c0_59] : memref<16x128xbf16, #tpu.memory_space<vmem>>, vector<16x128xbf16>
    %cst_60 = arith.constant dense<0.000000e+00> : vector<32x128xf32>
    %73 = tpu.matmul %56, %72, %cst_60 {dimension_numbers = #tpu.dot_dimension_numbers<[0], [0], [1], [1], [0, 1, 1, 1], [], []>} : vector<16x32xbf16>, vector<16x128xbf16>, vector<32x128xf32> -> vector<32x128xf32>
    %74 = arith.mulf %71, %73 : vector<32x128xf32>
    %cst_61 = arith.constant dense<0.000000e+00> : vector<128xf32>
    %75 = vector.multi_reduction <add>, %74, %cst_61 [0] : vector<32x128xf32> to vector<128xf32>
    %76 = vector.shape_cast %75 : vector<128xf32> to vector<1x128xf32>
    %c0_62 = arith.constant 0 : index
    %c0_63 = arith.constant 0 : index
    %77 = vector.load %arg23[%c0_62, %c0_63] : memref<1x128xf32, #tpu.memory_space<vmem>>, vector<1x128xf32>
    tpu.vector_store %arg23[%c0_62, %c0_63], %76 {strides = array<i32>} : memref<1x128xf32, #tpu.memory_space<vmem>>, vector<1x128xf32>,
    return
  }
}

</mosaic_0001>

<llo_original>
// kernel: tpu_custom_call.1
$region0: #{tpu_custom_call.1}
  #allocation0 [shape = 'u32[]', space=smem, size = 0x4, offset = 0x4, fixed_abs, tag = 'smem constant byte address 0x4 - core index']
  #allocation1 [shape = 'u32[144,128]{1,0:T(1,128)}', space=vmem, size = 0x12000, scoped, tag = 'internal scratch']
  %s0 = inlined_call_operand.hbm [shape: bf16[16,32], index: 0, kind: input, shape index: {}]
  %s1 = inlined_call_operand.hbm [shape: bf16[16,32], index: 1, kind: input, shape index: {}]
  %s2 = inlined_call_operand.vmem [shape: f32[16,32], index: 2, kind: input, shape index: {}]
  %s3 = inlined_call_operand.vmem [shape: bf16[32,32], index: 3, kind: input, shape index: {}]
  %s4 = inlined_call_operand.hbm [shape: f32[1,32], index: 4, kind: input, shape index: {}]
  %s5 = inlined_call_operand.hbm [shape: bf16[16,16], index: 5, kind: input, shape index: {}]
  %s6 = inlined_call_operand.vmem [shape: f32[16,1], index: 6, kind: input, shape index: {}]
  %s7 = inlined_call_operand.hbm [shape: bf16[16,16], index: 7, kind: input, shape index: {}]
  %s8 = inlined_call_operand.vmem [shape: f32[16,1], index: 8, kind: input, shape index: {}]
  %s9 = inlined_call_operand.vmem [shape: bf16[32,32], index: 9, kind: input, shape index: {}]
  %s10 = inlined_call_operand.vmem [shape: bf16[32,32], index: 10, kind: input, shape index: {}]
  %s11 = inlined_call_operand.vmem [shape: f32[1,32], index: 11, kind: input, shape index: {}]
  %s12 = inlined_call_operand.hbm [shape: bf16[32,32], index: 12, kind: input, shape index: {}]
  %s13 = inlined_call_operand.vmem [shape: bf16[32,32], index: 13, kind: input, shape index: {}]
  %s14 = inlined_call_operand.hbm [shape: f32[1,32], index: 14, kind: input, shape index: {}]
  %s15 = inlined_call_operand.hbm [shape: bf16[32,32], index: 15, kind: input, shape index: {}]
  %s16 = inlined_call_operand.hbm [shape: bf16[32,32], index: 16, kind: input, shape index: {}]
  %s17 = inlined_call_operand.hbm [shape: f32[1,32], index: 17, kind: input, shape index: {}]
  %s18 = inlined_call_operand.vmem [shape: bf16[32,32], index: 18, kind: input, shape index: {}]
  %s19 = inlined_call_operand.hbm [shape: bf16[32,32], index: 19, kind: input, shape index: {}]
  %s20 = inlined_call_operand.hbm [shape: f32[1,32], index: 20, kind: input, shape index: {}]
  %s21 = inlined_call_operand.vmem [shape: bf16[16,128], index: 21, kind: input, shape index: {}]
  %s22 = inlined_call_operand.vmem [shape: bf16[16,128], index: 22, kind: input, shape index: {}]
  %s23 = inlined_call_operand.hbm [shape: f32[1,128], index: 23, kind: output, shape index: {}]
  %s24 = sld [smem:[#allocation0]]
  $region150: #{tpu_custom_call.1} parent=0
    _
  %s26 = ssub.s32 1, %s24
  %s27 = scalar_select 0, %s26, %s24
  $region1: #{tpu_custom_call.1} parent=0
    #allocation2 [shape = 'u8[4096]{0}', space=vmem, size = 0x1000, scoped, tag = 'input window, operand 0, single buffered']
    #allocation3 [shape = 's32[1]{0}', space=sflag, size = 0x4, scoped, tag = 'scoped memory for tpu_custom_call.1']
    #allocation4 [shape = 's32[1]{0}', space=sflag, size = 0x4, scoped, tag = 'scoped memory for tpu_custom_call.1']
    #allocation5 [shape = 'u8[4096]{0}', space=vmem, size = 0x1000, scoped, tag = 'input window, operand 1, single buffered']
    #allocation6 [shape = 's32[1]{0}', space=sflag, size = 0x4, scoped, tag = 'scoped memory for tpu_custom_call.1']
    #allocation7 [shape = 'u8[512]{0}', space=vmem, size = 0x400, scoped, tag = 'input window, operand 4, single buffered']
    #allocation8 [shape = 'u8[4096]{0}', space=vmem, size = 0x1000, scoped, tag = 'input window, operand 5, single buffered']
    #allocation9 [shape = 's32[1]{0}', space=sflag, size = 0x4, scoped, tag = 'scoped memory for tpu_custom_call.1']
    #allocation10 [shape = 'u8[4096]{0}', space=vmem, size = 0x1000, scoped, tag = 'input window, operand 7, single buffered']
    #allocation11 [shape = 'u8[8192]{0}', space=vmem, size = 0x2000, scoped, tag = 'input window, operand 12, single buffered']
    #allocation12 [shape = 's32[1]{0}', space=sflag, size = 0x4, scoped, tag = 'scoped memory for tpu_custom_call.1']
    #allocation13 [shape = 'u8[512]{0}', space=vmem, size = 0x400, scoped, tag = 'input window, operand 14, single buffered']
    #allocation14 [shape = 'u8[8192]{0}', space=vmem, size = 0x2000, scoped, tag = 'input window, operand 15, single buffered']
    #allocation15 [shape = 's32[1]{0}', space=sflag, size = 0x4, scoped, tag = 'scoped memory for tpu_custom_call.1']
    #allocation16 [shape = 'u8[8192]{0}', space=vmem, size = 0x2000, scoped, tag = 'input window, operand 16, single buffered']
    #allocation17 [shape = 'u8[512]{0}', space=vmem, size = 0x400, scoped, tag = 'input window, operand 17, single buffered']
    #allocation18 [shape = 's32[1]{0}', space=sflag, size = 0x4, scoped, tag = 'scoped memory for tpu_custom_call.1']
    #allocation19 [shape = 'u8[8192]{0}', space=vmem, size = 0x2000, scoped, tag = 'input window, operand 19, single buffered']
    #allocation20 [shape = 'u8[512]{0}', space=vmem, size = 0x400, scoped, tag = 'input window, operand 20, single buffered']
    #allocation21 [shape = 's32[1]{0}', space=sflag, size = 0x4, scoped, tag = 'scoped memory for tpu_custom_call.1']
    #allocation22 [shape = 'u8[512]{0}', space=vmem, size = 0x400, scoped, tag = 'output window, operand 0, single buffered']
    %28 = vsyncpa [#allocation3], 0
    %29 = vsyncpa [#allocation6], 0
    %30 = vsyncpa [#allocation9], 0
    %31 = vsyncpa [#allocation12], 0
    %32 = vsyncpa [#allocation15], 0
    %33 = vsyncpa [#allocation18], 0
    %34 = vsyncpa [#allocation21], 0
    %35 = vsyncpa [#allocation4], 0
    // Predicated region
    $region2: #{tpu_custom_call.1} parent=1 // pred_check
      _
    $region3: #{tpu_custom_call.1} parent=1 // pred_check_branch
      %37 = sbr.rel (0) target = $region5
    $region4: #{tpu_custom_call.1} parent=1 // pred_region
      %s39 = ssub.s32 128, 128
      %40 = vsyncadd [#allocation3], %s39
      %s41 = sshll.u32 [#allocation2], 4
      %s42 = int_to_ptr.vmem [resolvable:$true] %s41
      %47 = dma.hbm_to_vmem [thread:$0]  %s0, 128, %s42, [#allocation3], 64, 64, 4
    $region5: #{tpu_custom_call.1} parent=1 // pred_fallthru
      _
    // Predicated region
    $region6: #{tpu_custom_call.1} parent=1 // pred_check
      _
    $region7: #{tpu_custom_call.1} parent=1 // pred_check_branch
      %49 = sbr.rel (0) target = $region9
    $region8: #{tpu_custom_call.1} parent=1 // pred_region
      %s51 = ssub.s32 128, 128
      %52 = vsyncadd [#allocation6], %s51
      %s53 = sshll.u32 [#allocation5], 4
      %s54 = int_to_ptr.vmem [resolvable:$true] %s53
      %59 = dma.hbm_to_vmem [thread:$0]  %s1, 128, %s54, [#allocation6], 64, 64, 4
    $region9: #{tpu_custom_call.1} parent=1 // pred_fallthru
      _
    // Predicated region
    $region10: #{tpu_custom_call.1} parent=1 // pred_check
      _
    $region11: #{tpu_custom_call.1} parent=1 // pred_check_branch
      %61 = sbr.rel (0) target = $region13
    $region12: #{tpu_custom_call.1} parent=1 // pred_region
      _
    $region13: #{tpu_custom_call.1} parent=1 // pred_fallthru
      _
    // Predicated region
    $region14: #{tpu_custom_call.1} parent=1 // pred_check
      _
    $region15: #{tpu_custom_call.1} parent=1 // pred_check_branch
      %63 = sbr.rel (0) target = $region17
    $region16: #{tpu_custom_call.1} parent=1 // pred_region
      _
    $region17: #{tpu_custom_call.1} parent=1 // pred_fallthru
      _
    // Predicated region
    $region18: #{tpu_custom_call.1} parent=1 // pred_check
      _
    $region19: #{tpu_custom_call.1} parent=1 // pred_check_branch
      %65 = sbr.rel (0) target = $region21
    $region20: #{tpu_custom_call.1} parent=1 // pred_region
      %s67 = ssub.s32 16, 16
      %68 = vsyncadd [#allocation6], %s67
      %s70 = sshll.u32 [#allocation7], 4
      %s71 = int_to_ptr.vmem [resolvable:$true] %s70
      %73 = dma.hbm_to_vmem [thread:$0]  %s4, 16, %s71, [#allocation6]
    $region21: #{tpu_custom_call.1} parent=1 // pred_fallthru
      _
    // Predicated region
    $region22: #{tpu_custom_call.1} parent=1 // pred_check
      _
    $region23: #{tpu_custom_call.1} parent=1 // pred_check_branch
      %75 = sbr.rel (0) target = $region25
    $region24: #{tpu_custom_call.1} parent=1 // pred_region
      %s77 = ssub.s32 128, 128
      %78 = vsyncadd [#allocation9], %s77
      %s79 = sshll.u32 [#allocation8], 4
      %s80 = int_to_ptr.vmem [resolvable:$true] %s79
      %85 = dma.hbm_to_vmem [thread:$0]  %s5, 128, %s80, [#allocation9], 64, 64, 4
    $region25: #{tpu_custom_call.1} parent=1 // pred_fallthru
      _
    // Predicated region
    $region26: #{tpu_custom_call.1} parent=1 // pred_check
      _
    $region27: #{tpu_custom_call.1} parent=1 // pred_check_branch
      %87 = sbr.rel (0) target = $region29
    $region28: #{tpu_custom_call.1} parent=1 // pred_region
      _
    $region29: #{tpu_custom_call.1} parent=1 // pred_fallthru
      _
    // Predicated region
    $region30: #{tpu_custom_call.1} parent=1 // pred_check
      _
    $region31: #{tpu_custom_call.1} parent=1 // pred_check_branch
      %89 = sbr.rel (0) target = $region33
    $region32: #{tpu_custom_call.1} parent=1 // pred_region
      %s91 = ssub.s32 128, 128
      %92 = vsyncadd [#allocation9], %s91
      %s93 = sshll.u32 [#allocation10], 4
      %s94 = int_to_ptr.vmem [resolvable:$true] %s93
      %99 = dma.hbm_to_vmem [thread:$0]  %s7, 128, %s94, [#allocation9], 64, 64, 4
    $region33: #{tpu_custom_call.1} parent=1 // pred_fallthru
      _
    // Predicated region
    $region34: #{tpu_custom_call.1} parent=1 // pred_check
      _
    $region35: #{tpu_custom_call.1} parent=1 // pred_check_branch
      %101 = sbr.rel (0) target = $region37
    $region36: #{tpu_custom_call.1} parent=1 // pred_region
      _
    $region37: #{tpu_custom_call.1} parent=1 // pred_fallthru
      _
    // Predicated region
    $region38: #{tpu_custom_call.1} parent=1 // pred_check
      _
    $region39: #{tpu_custom_call.1} parent=1 // pred_check_branch
      %103 = sbr.rel (0) target = $region41
    $region40: #{tpu_custom_call.1} parent=1 // pred_region
      _
    $region41: #{tpu_custom_call.1} parent=1 // pred_fallthru
      _
    // Predicated region
    $region42: #{tpu_custom_call.1} parent=1 // pred_check
      _
    $region43: #{tpu_custom_call.1} parent=1 // pred_check_branch
      %105 = sbr.rel (0) target = $region45
    $region44: #{tpu_custom_call.1} parent=1 // pred_region
      _
    $region45: #{tpu_custom_call.1} parent=1 // pred_fallthru
      _
    // Predicated region
    $region46: #{tpu_custom_call.1} parent=1 // pred_check
      _
    $region47: #{tpu_custom_call.1} parent=1 // pred_check_branch
      %107 = sbr.rel (0) target = $region49
    $region48: #{tpu_custom_call.1} parent=1 // pred_region
      _
    $region49: #{tpu_custom_call.1} parent=1 // pred_fallthru
      _
    // Predicated region
    $region50: #{tpu_custom_call.1} parent=1 // pred_check
      _
    $region51: #{tpu_custom_call.1} parent=1 // pred_check_branch
      %109 = sbr.rel (0) target = $region53
    $region52: #{tpu_custom_call.1} parent=1 // pred_region
      %s111 = ssub.s32 256, 256
      %112 = vsyncadd [#allocation12], %s111
      %s113 = sshll.u32 [#allocation11], 4
      %s114 = int_to_ptr.vmem [resolvable:$true] %s113
      %119 = dma.hbm_to_vmem [thread:$0]  %s12, 256, %s114, [#allocation12], 64, 64, 4
    $region53: #{tpu_custom_call.1} parent=1 // pred_fallthru
      _
    // Predicated region
    $region54: #{tpu_custom_call.1} parent=1 // pred_check
      _
    $region55: #{tpu_custom_call.1} parent=1 // pred_check_branch
      %121 = sbr.rel (0) target = $region57
    $region56: #{tpu_custom_call.1} parent=1 // pred_region
      _
    $region57: #{tpu_custom_call.1} parent=1 // pred_fallthru
      _
    // Predicated region
    $region58: #{tpu_custom_call.1} parent=1 // pred_check
      _
    $region59: #{tpu_custom_call.1} parent=1 // pred_check_branch
      %123 = sbr.rel (0) target = $region61
    $region60: #{tpu_custom_call.1} parent=1 // pred_region
      %s125 = ssub.s32 16, 16
      %126 = vsyncadd [#allocation12], %s125
      %s128 = sshll.u32 [#allocation13], 4
      %s129 = int_to_ptr.vmem [resolvable:$true] %s128
      %131 = dma.hbm_to_vmem [thread:$0]  %s14, 16, %s129, [#allocation12]
    $region61: #{tpu_custom_call.1} parent=1 // pred_fallthru
      _
    // Predicated region
    $region62: #{tpu_custom_call.1} parent=1 // pred_check
      _
    $region63: #{tpu_custom_call.1} parent=1 // pred_check_branch
      %133 = sbr.rel (0) target = $region65
    $region64: #{tpu_custom_call.1} parent=1 // pred_region
      %s135 = ssub.s32 256, 256
      %136 = vsyncadd [#allocation15], %s135
      %s137 = sshll.u32 [#allocation14], 4
      %s138 = int_to_ptr.vmem [resolvable:$true] %s137
      %143 = dma.hbm_to_vmem [thread:$0]  %s15, 256, %s138, [#allocation15], 64, 64, 4
    $region65: #{tpu_custom_call.1} parent=1 // pred_fallthru
      _
    // Predicated region
    $region66: #{tpu_custom_call.1} parent=1 // pred_check
      _
    $region67: #{tpu_custom_call.1} parent=1 // pred_check_branch
      %145 = sbr.rel (0) target = $region69
    $region68: #{tpu_custom_call.1} parent=1 // pred_region
      %s147 = ssub.s32 256, 256
      %148 = vsyncadd [#allocation15], %s147
      %s149 = sshll.u32 [#allocation16], 4
      %s150 = int_to_ptr.vmem [resolvable:$true] %s149
      %155 = dma.hbm_to_vmem [thread:$0]  %s16, 256, %s150, [#allocation15], 64, 64, 4
    $region69: #{tpu_custom_call.1} parent=1 // pred_fallthru
      _
    // Predicated region
    $region70: #{tpu_custom_call.1} parent=1 // pred_check
      _
    $region71: #{tpu_custom_call.1} parent=1 // pred_check_branch
      %157 = sbr.rel (0) target = $region73
    $region72: #{tpu_custom_call.1} parent=1 // pred_region
      %s159 = ssub.s32 16, 16
      %160 = vsyncadd [#allocation18], %s159
      %s162 = sshll.u32 [#allocation17], 4
      %s163 = int_to_ptr.vmem [resolvable:$true] %s162
      %165 = dma.hbm_to_vmem [thread:$0]  %s17, 16, %s163, [#allocation18]
    $region73: #{tpu_custom_call.1} parent=1 // pred_fallthru
      _
    // Predicated region
    $region74: #{tpu_custom_call.1} parent=1 // pred_check
      _
    $region75: #{tpu_custom_call.1} parent=1 // pred_check_branch
      %167 = sbr.rel (0) target = $region77
    $region76: #{tpu_custom_call.1} parent=1 // pred_region
      _
    $region77: #{tpu_custom_call.1} parent=1 // pred_fallthru
      _
    // Predicated region
    $region78: #{tpu_custom_call.1} parent=1 // pred_check
      _
    $region79: #{tpu_custom_call.1} parent=1 // pred_check_branch
      %169 = sbr.rel (0) target = $region81
    $region80: #{tpu_custom_call.1} parent=1 // pred_region
      %s171 = ssub.s32 256, 256
      %172 = vsyncadd [#allocation18], %s171
      %s173 = sshll.u32 [#allocation19], 4
      %s174 = int_to_ptr.vmem [resolvable:$true] %s173
      %179 = dma.hbm_to_vmem [thread:$0]  %s19, 256, %s174, [#allocation18], 64, 64, 4
    $region81: #{tpu_custom_call.1} parent=1 // pred_fallthru
      _
    // Predicated region
    $region82: #{tpu_custom_call.1} parent=1 // pred_check
      _
    $region83: #{tpu_custom_call.1} parent=1 // pred_check_branch
      %181 = sbr.rel (0) target = $region85
    $region84: #{tpu_custom_call.1} parent=1 // pred_region
      %s183 = ssub.s32 16, 16
      %184 = vsyncadd [#allocation21], %s183
      %s186 = sshll.u32 [#allocation20], 4
      %s187 = int_to_ptr.vmem [resolvable:$true] %s186
      %189 = dma.hbm_to_vmem [thread:$0]  %s20, 16, %s187, [#allocation21]
    $region85: #{tpu_custom_call.1} parent=1 // pred_fallthru
      _
    // Predicated region
    $region86: #{tpu_custom_call.1} parent=1 // pred_check
      _
    $region87: #{tpu_custom_call.1} parent=1 // pred_check_branch
      %191 = sbr.rel (0) target = $region89
    $region88: #{tpu_custom_call.1} parent=1 // pred_region
      _
    $region89: #{tpu_custom_call.1} parent=1 // pred_fallthru
      _
    // Predicated region
    $region90: #{tpu_custom_call.1} parent=1 // pred_check
      _
    $region91: #{tpu_custom_call.1} parent=1 // pred_check_branch
      %193 = sbr.rel (0) target = $region93
    $region92: #{tpu_custom_call.1} parent=1 // pred_region
      _
    $region93: #{tpu_custom_call.1} parent=1 // pred_fallthru
      _
    // Predicated region
    $region94: #{tpu_custom_call.1} parent=1 // pred_check
      _
    $region95: #{tpu_custom_call.1} parent=1 // pred_check_branch
      %195 = sbr.rel (0) target = $region97
    $region96: #{tpu_custom_call.1} parent=1 // pred_region
      %196 = dma.done [#allocation3], 128
    $region97: #{tpu_custom_call.1} parent=1 // pred_fallthru
      _
    // Predicated region
    $region98: #{tpu_custom_call.1} parent=1 // pred_check
      _
    $region99: #{tpu_custom_call.1} parent=1 // pred_check_branch
      %198 = sbr.rel (0) target = $region101
    $region100: #{tpu_custom_call.1} parent=1 // pred_region
      %199 = dma.done [#allocation6], 128
    $region101: #{tpu_custom_call.1} parent=1 // pred_fallthru
      _
    // Predicated region
    $region102: #{tpu_custom_call.1} parent=1 // pred_check
      _
    $region103: #{tpu_custom_call.1} parent=1 // pred_check_branch
      %201 = sbr.rel (0) target = $region105
    $region104: #{tpu_custom_call.1} parent=1 // pred_region
      %202 = dma.done [#allocation6], 16
    $region105: #{tpu_custom_call.1} parent=1 // pred_fallthru
      _
    // Predicated region
    $region106: #{tpu_custom_call.1} parent=1 // pred_check
      _
    $region107: #{tpu_custom_call.1} parent=1 // pred_check_branch
      %204 = sbr.rel (0) target = $region109
    $region108: #{tpu_custom_call.1} parent=1 // pred_region
      %205 = dma.done [#allocation9], 128
    $region109: #{tpu_custom_call.1} parent=1 // pred_fallthru
      _
    // Predicated region
    $region110: #{tpu_custom_call.1} parent=1 // pred_check
      _
    $region111: #{tpu_custom_call.1} parent=1 // pred_check_branch
      %207 = sbr.rel (0) target = $region113
    $region112: #{tpu_custom_call.1} parent=1 // pred_region
      %208 = dma.done [#allocation9], 128
    $region113: #{tpu_custom_call.1} parent=1 // pred_fallthru
      _
    // Predicated region
    $region114: #{tpu_custom_call.1} parent=1 // pred_check
      _
    $region115: #{tpu_custom_call.1} parent=1 // pred_check_branch
      %210 = sbr.rel (0) target = $region117
    $region116: #{tpu_custom_call.1} parent=1 // pred_region
      %211 = dma.done [#allocation12], 256
    $region117: #{tpu_custom_call.1} parent=1 // pred_fallthru
      _
    // Predicated region
    $region118: #{tpu_custom_call.1} parent=1 // pred_check
      _
    $region119: #{tpu_custom_call.1} parent=1 // pred_check_branch
      %213 = sbr.rel (0) target = $region121
    $region120: #{tpu_custom_call.1} parent=1 // pred_region
      %214 = dma.done [#allocation12], 16
    $region121: #{tpu_custom_call.1} parent=1 // pred_fallthru
      _
    // Predicated region
    $region122: #{tpu_custom_call.1} parent=1 // pred_check
      _
    $region123: #{tpu_custom_call.1} parent=1 // pred_check_branch
      %216 = sbr.rel (0) target = $region125
    $region124: #{tpu_custom_call.1} parent=1 // pred_region
      %217 = dma.done [#allocation15], 256
    $region125: #{tpu_custom_call.1} parent=1 // pred_fallthru
      _
    // Predicated region
    $region126: #{tpu_custom_call.1} parent=1 // pred_check
      _
    $region127: #{tpu_custom_call.1} parent=1 // pred_check_branch
      %219 = sbr.rel (0) target = $region129
    $region128: #{tpu_custom_call.1} parent=1 // pred_region
      %220 = dma.done [#allocation15], 256
    $region129: #{tpu_custom_call.1} parent=1 // pred_fallthru
      _
    // Predicated region
    $region130: #{tpu_custom_call.1} parent=1 // pred_check
      _
    $region131: #{tpu_custom_call.1} parent=1 // pred_check_branch
      %222 = sbr.rel (0) target = $region133
    $region132: #{tpu_custom_call.1} parent=1 // pred_region
      %223 = dma.done [#allocation18], 16
    $region133: #{tpu_custom_call.1} parent=1 // pred_fallthru
      _
    // Predicated region
    $region134: #{tpu_custom_call.1} parent=1 // pred_check
      _
    $region135: #{tpu_custom_call.1} parent=1 // pred_check_branch
      %225 = sbr.rel (0) target = $region137
    $region136: #{tpu_custom_call.1} parent=1 // pred_region
      %226 = dma.done [#allocation18], 256
    $region137: #{tpu_custom_call.1} parent=1 // pred_fallthru
      _
    // Predicated region
    $region138: #{tpu_custom_call.1} parent=1 // pred_check
      _
    $region139: #{tpu_custom_call.1} parent=1 // pred_check_branch
      %228 = sbr.rel (0) target = $region141
    $region140: #{tpu_custom_call.1} parent=1 // pred_region
      %229 = dma.done [#allocation21], 16
    $region141: #{tpu_custom_call.1} parent=1 // pred_fallthru
      _
    %v231 = vld [vmem:[#allocation2] sm:$0xf]
    %v232 = vld [vmem:[#allocation2 + $0x4] sm:$0xf]
    %v233 = vld [vmem:[#allocation5] sm:$0xf]
    %v234 = vld [vmem:[#allocation5 + $0x4] sm:$0xf]
    %v235 = vld [vmem:[%s3] sm:$0xf]
    %v236 = vld [vmem:[%s3 + $0x4] sm:$0xf]
    %v237 = vld [vmem:[%s3 + $0x8] sm:$0xf]
    %v238 = vld [vmem:[%s3 + $0xc] sm:$0xf]
    %v239 = vld [vmem:[#allocation7] sm:$0x1]
    %v241 = vlaneseq
    %v242 = vshrl.u32 %v241, 7
    %v243 = vsub.s32 0, %v242
    %v244 = vrot.slane %v239, %v243
    %v248 = vunpack.c.l.b16 %v233
    %v249 = vunpack.c.l.b16 %v234
    %v250 = vpack.c.b16 %v249, %v248
    %v255 = vunpack.c.l.b16 %v235
    %v256 = vunpack.c.l.b16 %v236
    %v257 = vunpack.c.l.b16 %v237
    %v258 = vunpack.c.l.b16 %v238
    %v259 = vpack.c.b16 %v256, %v255
    %v260 = vpack.c.b16 %v258, %v257
    %vm263 = vcmask 261120
    %v265 = vsel %vm263, %v250, 0
    %267 = vmatprep.subr.bf16.mxu0 0
    %268 = vmatpush1.bf16.msra.mxu0 %v259
    %269 = vmatprep.subr.bf16.mxu0 0
    %270 = vmatpush1.bf16.msra.mxu0 %v260
    %271 = vmatprep.subr.bf16.mxu0 0
    %272 = vmatpush1.bf16.msra.mxu0 0
    %273 = vmatprep.subr.bf16.mxu0 0
    %274 = vmatpush1.bf16.msra.mxu0 0
    %275 = vmatprep.subr.bf16.mxu0 0
    %276 = vmatpush1.bf16.msra.mxu0 0
    %277 = vmatprep.subr.bf16.mxu0 0
    %278 = vmatpush1.bf16.msra.mxu0 0
    %279 = vmatprep.subr.bf16.mxu0 0
    %280 = vmatpush1.bf16.msra.mxu0 0
    %281 = vmatprep.subr.bf16.mxu0 0
    %282 = vmatpush1.bf16.msra.mxu0 0
    %283 = vmatprep.subr.bf16.mxu0 0
    %284 = vmatpush1.bf16.msra.mxu0 0
    %285 = vmatprep.subr.bf16.mxu0 0
    %286 = vmatpush1.bf16.msra.mxu0 0
    %287 = vmatprep.subr.bf16.mxu0 0
    %288 = vmatpush1.bf16.msra.mxu0 0
    %289 = vmatprep.subr.bf16.mxu0 0
    %290 = vmatpush1.bf16.msra.mxu0 0
    %291 = vmatprep.subr.bf16.mxu0 0
    %292 = vmatpush1.bf16.msra.mxu0 0
    %293 = vmatprep.subr.bf16.mxu0 0
    %294 = vmatpush1.bf16.msra.mxu0 0
    %295 = vmatprep.subr.bf16.mxu0 0
    %296 = vmatpush1.bf16.msra.mxu0 0
    %297 = vmatprep.subr.bf16.mxu0 0
    %298 = vmatpush1.bf16.msra.mxu0 0
    %299 = vmatprep.mubr.bf16.mxu0 0
    %300 = vmatmul.mubr.bf16.gmra.mrb[0].mxu0 %v265
    %v301 = vpop.f32.mrb[0].mxu0
    %v302 = vadd.f32 %v244, %v301
    %v303 = vpop.f32.mrb[0].mxu0
    %v304 = vpop.f32.mrb[0].mxu0
    %v305 = vadd.f32 %v244, %v304
    %v306 = vpop.f32.mrb[0].mxu0
    %307 = vdwg.mxu0
    %v308 = vld [vmem:[%s2] sm:$0xff]
    %v309 = vld [vmem:[%s2 + $0x8] sm:$0xff]
    %v310 = vadd.f32 %v302, %v308
    %v311 = vadd.f32 %v305, %v309
    %v312 = vpack.c.bf16 %v311, %v310
    %v313 = vld [vmem:[#allocation8] sm:$0xf]
    %v314 = vld [vmem:[#allocation8 + $0x4] sm:$0xf]
    %v315 = vld [vmem:[%s6] sm:$0xff]
    %v316 = vld [vmem:[%s6 + $0x8] sm:$0xff]
    %v317 = vld [vmem:[#allocation10] sm:$0xf]
    %v318 = vld [vmem:[#allocation10 + $0x4] sm:$0xf]
    %v319 = vld [vmem:[%s8] sm:$0xff]
    %v320 = vld [vmem:[%s8 + $0x8] sm:$0xff]
    %v323 = vunpack.c.l.b16 %v313
    %v324 = vunpack.c.l.b16 %v314
    %v325 = vpack.c.b16 %v324, %v323
    %v328 = vunpack.c.l.b16 %v231
    %v329 = vunpack.c.l.b16 %v232
    %v330 = vpack.c.b16 %v329, %v328
    %vm332 = vcmask 130048
    %v334 = vsel %vm332, %v325, 0
    %336 = vmatprep.subr.bf16.mxu0 0
    %337 = vmatpush1.bf16.msra.mxu0 %v330
    %338 = vmatprep.subr.bf16.mxu0 0
    %339 = vmatpush1.bf16.msra.mxu0 0
    %340 = vmatprep.subr.bf16.mxu0 0
    %341 = vmatpush1.bf16.msra.mxu0 0
    %342 = vmatprep.subr.bf16.mxu0 0
    %343 = vmatpush1.bf16.msra.mxu0 0
    %344 = vmatprep.subr.bf16.mxu0 0
    %345 = vmatpush1.bf16.msra.mxu0 0
    %346 = vmatprep.subr.bf16.mxu0 0
    %347 = vmatpush1.bf16.msra.mxu0 0
    %348 = vmatprep.subr.bf16.mxu0 0
    %349 = vmatpush1.bf16.msra.mxu0 0
    %350 = vmatprep.subr.bf16.mxu0 0
    %351 = vmatpush1.bf16.msra.mxu0 0
    %352 = vmatprep.subr.bf16.mxu0 0
    %353 = vmatpush1.bf16.msra.mxu0 0
    %354 = vmatprep.subr.bf16.mxu0 0
    %355 = vmatpush1.bf16.msra.mxu0 0
    %356 = vmatprep.subr.bf16.mxu0 0
    %357 = vmatpush1.bf16.msra.mxu0 0
    %358 = vmatprep.subr.bf16.mxu0 0
    %359 = vmatpush1.bf16.msra.mxu0 0
    %360 = vmatprep.subr.bf16.mxu0 0
    %361 = vmatpush1.bf16.msra.mxu0 0
    %362 = vmatprep.subr.bf16.mxu0 0
    %363 = vmatpush1.bf16.msra.mxu0 0
    %364 = vmatprep.subr.bf16.mxu0 0
    %365 = vmatpush1.bf16.msra.mxu0 0
    %366 = vmatprep.subr.bf16.mxu0 0
    %367 = vmatpush1.bf16.msra.mxu0 0
    %368 = vmatprep.mubr.bf16.mxu0 0
    %369 = vmatmul.mubr.bf16.gmra.mrb[0].mxu0 %v334
    %v370 = vpop.f32.mrb[0].mxu0
    %v371 = vadd.f32 0.0, %v370
    %v372 = vpop.f32.mrb[0].mxu0
    %v373 = vpop.f32.mrb[0].mxu0
    %v374 = vadd.f32 0.0, %v373
    %v375 = vpop.f32.mrb[0].mxu0
    %376 = vdwg.mxu0
    %378 = vset.pattern.permute.xlu0 0
    %379 = vperm.xlu0 %378, %v315
    %v380 = vpop.permute.xlu0 %379
    %383 = vset.pattern.permute.xlu0 0
    %384 = vperm.xlu0 %383, %v316
    %v385 = vpop.permute.xlu0 %384
    %v387 = vmul.f32 %v371, %v380
    %v388 = vmul.f32 %v374, %v385
    %v389 = vpack.c.bf16 %v388, %v387
    %v390 = vld [vmem:[%s9] sm:$0xf]
    %v391 = vld [vmem:[%s9 + $0x4] sm:$0xf]
    %v392 = vld [vmem:[%s9 + $0x8] sm:$0xf]
    %v393 = vld [vmem:[%s9 + $0xc] sm:$0xf]
    %v394 = vld [vmem:[%s10] sm:$0xf]
    %v395 = vld [vmem:[%s10 + $0x4] sm:$0xf]
    %v396 = vld [vmem:[%s10 + $0x8] sm:$0xf]
    %v397 = vld [vmem:[%s10 + $0xc] sm:$0xf]
    %v402 = vunpack.c.l.b16 %v394
    %v403 = vunpack.c.l.b16 %v395
    %v404 = vunpack.c.l.b16 %v396
    %v405 = vunpack.c.l.b16 %v397
    %v406 = vpack.c.b16 %v403, %v402
    %v407 = vpack.c.b16 %v405, %v404
    %v411 = vsel %vm263, %v312, 0
    %413 = vmatprep.subr.bf16.mxu0 0
    %414 = vmatpush1.bf16.msra.mxu0 %v406
    %415 = vmatprep.subr.bf16.mxu0 0
    %416 = vmatpush1.bf16.msra.mxu0 %v407
    %417 = vmatprep.subr.bf16.mxu0 0
    %418 = vmatpush1.bf16.msra.mxu0 0
    %419 = vmatprep.subr.bf16.mxu0 0
    %420 = vmatpush1.bf16.msra.mxu0 0
    %421 = vmatprep.subr.bf16.mxu0 0
    %422 = vmatpush1.bf16.msra.mxu0 0
    %423 = vmatprep.subr.bf16.mxu0 0
    %424 = vmatpush1.bf16.msra.mxu0 0
    %425 = vmatprep.subr.bf16.mxu0 0
    %426 = vmatpush1.bf16.msra.mxu0 0
    %427 = vmatprep.subr.bf16.mxu0 0
    %428 = vmatpush1.bf16.msra.mxu0 0
    %429 = vmatprep.subr.bf16.mxu0 0
    %430 = vmatpush1.bf16.msra.mxu0 0
    %431 = vmatprep.subr.bf16.mxu0 0
    %432 = vmatpush1.bf16.msra.mxu0 0
    %433 = vmatprep.subr.bf16.mxu0 0
    %434 = vmatpush1.bf16.msra.mxu0 0
    %435 = vmatprep.subr.bf16.mxu0 0
    %436 = vmatpush1.bf16.msra.mxu0 0
    %437 = vmatprep.subr.bf16.mxu0 0
    %438 = vmatpush1.bf16.msra.mxu0 0
    %439 = vmatprep.subr.bf16.mxu0 0
    %440 = vmatpush1.bf16.msra.mxu0 0
    %441 = vmatprep.subr.bf16.mxu0 0
    %442 = vmatpush1.bf16.msra.mxu0 0
    %443 = vmatprep.subr.bf16.mxu0 0
    %444 = vmatpush1.bf16.msra.mxu0 0
    %445 = vmatprep.mubr.bf16.mxu0 0
    %446 = vmatmul.mubr.bf16.gmra.mrb[0].mxu0 %v411
    %v447 = vpop.f32.mrb[0].mxu0
    %v448 = vadd.f32 0.0, %v447
    %v449 = vpop.f32.mrb[0].mxu0
    %v450 = vpop.f32.mrb[0].mxu0
    %v451 = vadd.f32 0.0, %v450
    %v452 = vpop.f32.mrb[0].mxu0
    %453 = vdwg.mxu0
    %v458 = vunpack.c.l.b16 %v390
    %v459 = vunpack.c.l.b16 %v391
    %v460 = vunpack.c.l.b16 %v392
    %v461 = vunpack.c.l.b16 %v393
    %v462 = vpack.c.b16 %v459, %v458
    %v463 = vpack.c.b16 %v461, %v460
    %v467 = vsel %vm263, %v389, 0
    %469 = vmatprep.subr.bf16.mxu0 0
    %470 = vmatpush1.bf16.msra.mxu0 %v462
    %471 = vmatprep.subr.bf16.mxu0 0
    %472 = vmatpush1.bf16.msra.mxu0 %v463
    %473 = vmatprep.subr.bf16.mxu0 0
    %474 = vmatpush1.bf16.msra.mxu0 0
    %475 = vmatprep.subr.bf16.mxu0 0
    %476 = vmatpush1.bf16.msra.mxu0 0
    %477 = vmatprep.subr.bf16.mxu0 0
    %478 = vmatpush1.bf16.msra.mxu0 0
    %479 = vmatprep.subr.bf16.mxu0 0
    %480 = vmatpush1.bf16.msra.mxu0 0
    %481 = vmatprep.subr.bf16.mxu0 0
    %482 = vmatpush1.bf16.msra.mxu0 0
    %483 = vmatprep.subr.bf16.mxu0 0
    %484 = vmatpush1.bf16.msra.mxu0 0
    %485 = vmatprep.subr.bf16.mxu0 0
    %486 = vmatpush1.bf16.msra.mxu0 0
    %487 = vmatprep.subr.bf16.mxu0 0
    %488 = vmatpush1.bf16.msra.mxu0 0
    %489 = vmatprep.subr.bf16.mxu0 0
    %490 = vmatpush1.bf16.msra.mxu0 0
    %491 = vmatprep.subr.bf16.mxu0 0
    %492 = vmatpush1.bf16.msra.mxu0 0
    %493 = vmatprep.subr.bf16.mxu0 0
    %494 = vmatpush1.bf16.msra.mxu0 0
    %495 = vmatprep.subr.bf16.mxu0 0
    %496 = vmatpush1.bf16.msra.mxu0 0
    %497 = vmatprep.subr.bf16.mxu0 0
    %498 = vmatpush1.bf16.msra.mxu0 0
    %499 = vmatprep.subr.bf16.mxu0 0
    %500 = vmatpush1.bf16.msra.mxu0 0
    %501 = vmatprep.mubr.bf16.mxu0 0
    %502 = vmatmul.mubr.bf16.gmra.mrb[0].mxu0 %v467
    %v503 = vpop.f32.mrb[0].mxu0
    %v504 = vadd.f32 %v448, %v503
    %v505 = vpop.f32.mrb[0].mxu0
    %v506 = vpop.f32.mrb[0].mxu0
    %v507 = vadd.f32 %v451, %v506
    %v508 = vpop.f32.mrb[0].mxu0
    %509 = vdwg.mxu0
    %v510 = vld [vmem:[%s11] sm:$0x1]
    %v512 = vlaneseq
    %v513 = vshrl.u32 %v512, 7
    %v514 = vsub.s32 0, %v513
    %v515 = vrot.slane %v510, %v514
    %v517 = vadd.f32 %v504, %v515
    %v518 = vadd.f32 %v507, %v515
    %v519 = vmax.f32 %v517, 0.0
    %v520 = vmax.f32 %v518, 0.0
    %v521 = vpack.c.bf16 %v520, %v519
    %v524 = vunpack.c.l.b16 %v317
    %v525 = vunpack.c.l.b16 %v318
    %v526 = vpack.c.b16 %v525, %v524
    %v528 = vsel %vm332, %v526, 0
    %530 = vmatprep.subr.bf16.mxu0 0
    %531 = vmatpush1.bf16.msra.mxu0 %v312
    %532 = vmatprep.subr.bf16.mxu0 0
    %533 = vmatpush1.bf16.msra.mxu0 0
    %534 = vmatprep.subr.bf16.mxu0 0
    %535 = vmatpush1.bf16.msra.mxu0 0
    %536 = vmatprep.subr.bf16.mxu0 0
    %537 = vmatpush1.bf16.msra.mxu0 0
    %538 = vmatprep.subr.bf16.mxu0 0
    %539 = vmatpush1.bf16.msra.mxu0 0
    %540 = vmatprep.subr.bf16.mxu0 0
    %541 = vmatpush1.bf16.msra.mxu0 0
    %542 = vmatprep.subr.bf16.mxu0 0
    %543 = vmatpush1.bf16.msra.mxu0 0
    %544 = vmatprep.subr.bf16.mxu0 0
    %545 = vmatpush1.bf16.msra.mxu0 0
    %546 = vmatprep.subr.bf16.mxu0 0
    %547 = vmatpush1.bf16.msra.mxu0 0
    %548 = vmatprep.subr.bf16.mxu0 0
    %549 = vmatpush1.bf16.msra.mxu0 0
    %550 = vmatprep.subr.bf16.mxu0 0
    %551 = vmatpush1.bf16.msra.mxu0 0
    %552 = vmatprep.subr.bf16.mxu0 0
    %553 = vmatpush1.bf16.msra.mxu0 0
    %554 = vmatprep.subr.bf16.mxu0 0
    %555 = vmatpush1.bf16.msra.mxu0 0
    %556 = vmatprep.subr.bf16.mxu0 0
    %557 = vmatpush1.bf16.msra.mxu0 0
    %558 = vmatprep.subr.bf16.mxu0 0
    %559 = vmatpush1.bf16.msra.mxu0 0
    %560 = vmatprep.subr.bf16.mxu0 0
    %561 = vmatpush1.bf16.msra.mxu0 0
    %562 = vmatprep.mubr.bf16.mxu0 0
    %563 = vmatmul.mubr.bf16.gmra.mrb[0].mxu0 %v528
    %v564 = vpop.f32.mrb[0].mxu0
    %v565 = vadd.f32 0.0, %v564
    %v566 = vpop.f32.mrb[0].mxu0
    %v567 = vpop.f32.mrb[0].mxu0
    %v568 = vadd.f32 0.0, %v567
    %v569 = vpop.f32.mrb[0].mxu0
    %570 = vdwg.mxu0
    %572 = vset.pattern.permute.xlu0 0
    %573 = vperm.xlu0 %572, %v319
    %v574 = vpop.permute.xlu0 %573
    %577 = vset.pattern.permute.xlu0 0
    %578 = vperm.xlu0 %577, %v320
    %v579 = vpop.permute.xlu0 %578
    %v581 = vmul.f32 %v565, %v574
    %v582 = vmul.f32 %v568, %v579
    %v583 = vpack.c.bf16 %v582, %v581
    %v584 = vld [vmem:[#allocation11] sm:$0xf]
    %v585 = vld [vmem:[#allocation11 + $0x4] sm:$0xf]
    %v586 = vld [vmem:[#allocation11 + $0x8] sm:$0xf]
    %v587 = vld [vmem:[#allocation11 + $0xc] sm:$0xf]
    %v588 = vld [vmem:[%s13] sm:$0xf]
    %v589 = vld [vmem:[%s13 + $0x4] sm:$0xf]
    %v590 = vld [vmem:[%s13 + $0x8] sm:$0xf]
    %v591 = vld [vmem:[%s13 + $0xc] sm:$0xf]
    %v596 = vunpack.c.l.b16 %v588
    %v597 = vunpack.c.l.b16 %v589
    %v598 = vunpack.c.l.b16 %v590
    %v599 = vunpack.c.l.b16 %v591
    %v600 = vpack.c.b16 %v597, %v596
    %v601 = vpack.c.b16 %v599, %v598
    %v605 = vsel %vm263, %v330, 0
    %607 = vmatprep.subr.bf16.mxu0 0
    %608 = vmatpush1.bf16.msra.mxu0 %v600
    %609 = vmatprep.subr.bf16.mxu0 0
    %610 = vmatpush1.bf16.msra.mxu0 %v601
    %611 = vmatprep.subr.bf16.mxu0 0
    %612 = vmatpush1.bf16.msra.mxu0 0
    %613 = vmatprep.subr.bf16.mxu0 0
    %614 = vmatpush1.bf16.msra.mxu0 0
    %615 = vmatprep.subr.bf16.mxu0 0
    %616 = vmatpush1.bf16.msra.mxu0 0
    %617 = vmatprep.subr.bf16.mxu0 0
    %618 = vmatpush1.bf16.msra.mxu0 0
    %619 = vmatprep.subr.bf16.mxu0 0
    %620 = vmatpush1.bf16.msra.mxu0 0
    %621 = vmatprep.subr.bf16.mxu0 0
    %622 = vmatpush1.bf16.msra.mxu0 0
    %623 = vmatprep.subr.bf16.mxu0 0
    %624 = vmatpush1.bf16.msra.mxu0 0
    %625 = vmatprep.subr.bf16.mxu0 0
    %626 = vmatpush1.bf16.msra.mxu0 0
    %627 = vmatprep.subr.bf16.mxu0 0
    %628 = vmatpush1.bf16.msra.mxu0 0
    %629 = vmatprep.subr.bf16.mxu0 0
    %630 = vmatpush1.bf16.msra.mxu0 0
    %631 = vmatprep.subr.bf16.mxu0 0
    %632 = vmatpush1.bf16.msra.mxu0 0
    %633 = vmatprep.subr.bf16.mxu0 0
    %634 = vmatpush1.bf16.msra.mxu0 0
    %635 = vmatprep.subr.bf16.mxu0 0
    %636 = vmatpush1.bf16.msra.mxu0 0
    %637 = vmatprep.subr.bf16.mxu0 0
    %638 = vmatpush1.bf16.msra.mxu0 0
    %639 = vmatprep.mubr.bf16.mxu0 0
    %640 = vmatmul.mubr.bf16.gmra.mrb[0].mxu0 %v605
    %v641 = vpop.f32.mrb[0].mxu0
    %v642 = vadd.f32 0.0, %v641
    %v643 = vpop.f32.mrb[0].mxu0
    %v644 = vpop.f32.mrb[0].mxu0
    %v645 = vadd.f32 0.0, %v644
    %v646 = vpop.f32.mrb[0].mxu0
    %647 = vdwg.mxu0
    %v652 = vunpack.c.l.b16 %v584
    %v653 = vunpack.c.l.b16 %v585
    %v654 = vunpack.c.l.b16 %v586
    %v655 = vunpack.c.l.b16 %v587
    %v656 = vpack.c.b16 %v653, %v652
    %v657 = vpack.c.b16 %v655, %v654
    %v661 = vsel %vm263, %v583, 0
    %663 = vmatprep.subr.bf16.mxu0 0
    %664 = vmatpush1.bf16.msra.mxu0 %v656
    %665 = vmatprep.subr.bf16.mxu0 0
    %666 = vmatpush1.bf16.msra.mxu0 %v657
    %667 = vmatprep.subr.bf16.mxu0 0
    %668 = vmatpush1.bf16.msra.mxu0 0
    %669 = vmatprep.subr.bf16.mxu0 0
    %670 = vmatpush1.bf16.msra.mxu0 0
    %671 = vmatprep.subr.bf16.mxu0 0
    %672 = vmatpush1.bf16.msra.mxu0 0
    %673 = vmatprep.subr.bf16.mxu0 0
    %674 = vmatpush1.bf16.msra.mxu0 0
    %675 = vmatprep.subr.bf16.mxu0 0
    %676 = vmatpush1.bf16.msra.mxu0 0
    %677 = vmatprep.subr.bf16.mxu0 0
    %678 = vmatpush1.bf16.msra.mxu0 0
    %679 = vmatprep.subr.bf16.mxu0 0
    %680 = vmatpush1.bf16.msra.mxu0 0
    %681 = vmatprep.subr.bf16.mxu0 0
    %682 = vmatpush1.bf16.msra.mxu0 0
    %683 = vmatprep.subr.bf16.mxu0 0
    %684 = vmatpush1.bf16.msra.mxu0 0
    %685 = vmatprep.subr.bf16.mxu0 0
    %686 = vmatpush1.bf16.msra.mxu0 0
    %687 = vmatprep.subr.bf16.mxu0 0
    %688 = vmatpush1.bf16.msra.mxu0 0
    %689 = vmatprep.subr.bf16.mxu0 0
    %690 = vmatpush1.bf16.msra.mxu0 0
    %691 = vmatprep.subr.bf16.mxu0 0
    %692 = vmatpush1.bf16.msra.mxu0 0
    %693 = vmatprep.subr.bf16.mxu0 0
    %694 = vmatpush1.bf16.msra.mxu0 0
    %695 = vmatprep.mubr.bf16.mxu0 0
    %696 = vmatmul.mubr.bf16.gmra.mrb[0].mxu0 %v661
    %v697 = vpop.f32.mrb[0].mxu0
    %v698 = vadd.f32 %v642, %v697
    %v699 = vpop.f32.mrb[0].mxu0
    %v700 = vpop.f32.mrb[0].mxu0
    %v701 = vadd.f32 %v645, %v700
    %v702 = vpop.f32.mrb[0].mxu0
    %703 = vdwg.mxu0
    %v704 = vld [vmem:[#allocation13] sm:$0x1]
    %v706 = vlaneseq
    %v707 = vshrl.u32 %v706, 7
    %v708 = vsub.s32 0, %v707
    %v709 = vrot.slane %v704, %v708
    %v711 = vadd.f32 %v698, %v709
    %v712 = vadd.f32 %v701, %v709
    %v713 = vmax.f32 %v711, 0.0
    %v714 = vmax.f32 %v712, 0.0
    %v715 = vpack.c.bf16 %v714, %v713
    %716 = vmatprep.subr.bf16.mxu0 0
    %717 = vmatpush1.bf16.msra.mxu0 %v715
    %718 = vmatprep.subr.bf16.mxu0 0
    %719 = vmatpush1.bf16.msra.mxu0 0
    %720 = vmatprep.subr.bf16.mxu0 0
    %721 = vmatpush1.bf16.msra.mxu0 0
    %722 = vmatprep.subr.bf16.mxu0 0
    %723 = vmatpush1.bf16.msra.mxu0 0
    %724 = vmatprep.subr.bf16.mxu0 0
    %725 = vmatpush1.bf16.msra.mxu0 0
    %726 = vmatprep.subr.bf16.mxu0 0
    %727 = vmatpush1.bf16.msra.mxu0 0
    %728 = vmatprep.subr.bf16.mxu0 0
    %729 = vmatpush1.bf16.msra.mxu0 0
    %730 = vmatprep.subr.bf16.mxu0 0
    %731 = vmatpush1.bf16.msra.mxu0 0
    %732 = vmatprep.subr.bf16.mxu0 0
    %733 = vmatpush1.bf16.msra.mxu0 0
    %734 = vmatprep.subr.bf16.mxu0 0
    %735 = vmatpush1.bf16.msra.mxu0 0
    %736 = vmatprep.subr.bf16.mxu0 0
    %737 = vmatpush1.bf16.msra.mxu0 0
    %738 = vmatprep.subr.bf16.mxu0 0
    %739 = vmatpush1.bf16.msra.mxu0 0
    %740 = vmatprep.subr.bf16.mxu0 0
    %741 = vmatpush1.bf16.msra.mxu0 0
    %742 = vmatprep.subr.bf16.mxu0 0
    %743 = vmatpush1.bf16.msra.mxu0 0
    %744 = vmatprep.subr.bf16.mxu0 0
    %745 = vmatpush1.bf16.msra.mxu0 0
    %746 = vmatprep.subr.bf16.mxu0 0
    %747 = vmatpush1.bf16.msra.mxu0 0
    %748 = vmatprep.mubr.bf16.mxu0 0
    %749 = vmatmul.mubr.bf16.gmra.mrb[0].mxu0 %v334
    %v750 = vpop.f32.mrb[0].mxu0
    %v751 = vadd.f32 0.0, %v750
    %v752 = vpop.f32.mrb[0].mxu0
    %v753 = vpop.f32.mrb[0].mxu0
    %v754 = vadd.f32 0.0, %v753
    %v755 = vpop.f32.mrb[0].mxu0
    %756 = vdwg.mxu0
    %v757 = vmul.f32 %v751, %v380
    %v758 = vmul.f32 %v754, %v385
    %v759 = vpack.c.bf16 %v758, %v757
    %v760 = vld [vmem:[#allocation14] sm:$0xf]
    %v761 = vld [vmem:[#allocation14 + $0x4] sm:$0xf]
    %v762 = vld [vmem:[#allocation14 + $0x8] sm:$0xf]
    %v763 = vld [vmem:[#allocation14 + $0xc] sm:$0xf]
    %v764 = vld [vmem:[#allocation16] sm:$0xf]
    %v765 = vld [vmem:[#allocation16 + $0x4] sm:$0xf]
    %v766 = vld [vmem:[#allocation16 + $0x8] sm:$0xf]
    %v767 = vld [vmem:[#allocation16 + $0xc] sm:$0xf]
    %v772 = vunpack.c.l.b16 %v764
    %v773 = vunpack.c.l.b16 %v765
    %v774 = vunpack.c.l.b16 %v766
    %v775 = vunpack.c.l.b16 %v767
    %v776 = vpack.c.b16 %v773, %v772
    %v777 = vpack.c.b16 %v775, %v774
    %v781 = vsel %vm263, %v521, 0
    %783 = vmatprep.subr.bf16.mxu0 0
    %784 = vmatpush1.bf16.msra.mxu0 %v776
    %785 = vmatprep.subr.bf16.mxu0 0
    %786 = vmatpush1.bf16.msra.mxu0 %v777
    %787 = vmatprep.subr.bf16.mxu0 0
    %788 = vmatpush1.bf16.msra.mxu0 0
    %789 = vmatprep.subr.bf16.mxu0 0
    %790 = vmatpush1.bf16.msra.mxu0 0
    %791 = vmatprep.subr.bf16.mxu0 0
    %792 = vmatpush1.bf16.msra.mxu0 0
    %793 = vmatprep.subr.bf16.mxu0 0
    %794 = vmatpush1.bf16.msra.mxu0 0
    %795 = vmatprep.subr.bf16.mxu0 0
    %796 = vmatpush1.bf16.msra.mxu0 0
    %797 = vmatprep.subr.bf16.mxu0 0
    %798 = vmatpush1.bf16.msra.mxu0 0
    %799 = vmatprep.subr.bf16.mxu0 0
    %800 = vmatpush1.bf16.msra.mxu0 0
    %801 = vmatprep.subr.bf16.mxu0 0
    %802 = vmatpush1.bf16.msra.mxu0 0
    %803 = vmatprep.subr.bf16.mxu0 0
    %804 = vmatpush1.bf16.msra.mxu0 0
    %805 = vmatprep.subr.bf16.mxu0 0
    %806 = vmatpush1.bf16.msra.mxu0 0
    %807 = vmatprep.subr.bf16.mxu0 0
    %808 = vmatpush1.bf16.msra.mxu0 0
    %809 = vmatprep.subr.bf16.mxu0 0
    %810 = vmatpush1.bf16.msra.mxu0 0
    %811 = vmatprep.subr.bf16.mxu0 0
    %812 = vmatpush1.bf16.msra.mxu0 0
    %813 = vmatprep.subr.bf16.mxu0 0
    %814 = vmatpush1.bf16.msra.mxu0 0
    %815 = vmatprep.mubr.bf16.mxu0 0
    %816 = vmatmul.mubr.bf16.gmra.mrb[0].mxu0 %v781
    %v817 = vpop.f32.mrb[0].mxu0
    %v818 = vadd.f32 0.0, %v817
    %v819 = vpop.f32.mrb[0].mxu0
    %v820 = vpop.f32.mrb[0].mxu0
    %v821 = vadd.f32 0.0, %v820
    %v822 = vpop.f32.mrb[0].mxu0
    %823 = vdwg.mxu0
    %v828 = vunpack.c.l.b16 %v760
    %v829 = vunpack.c.l.b16 %v761
    %v830 = vunpack.c.l.b16 %v762
    %v831 = vunpack.c.l.b16 %v763
    %v832 = vpack.c.b16 %v829, %v828
    %v833 = vpack.c.b16 %v831, %v830
    %v837 = vsel %vm263, %v759, 0
    %839 = vmatprep.subr.bf16.mxu0 0
    %840 = vmatpush1.bf16.msra.mxu0 %v832
    %841 = vmatprep.subr.bf16.mxu0 0
    %842 = vmatpush1.bf16.msra.mxu0 %v833
    %843 = vmatprep.subr.bf16.mxu0 0
    %844 = vmatpush1.bf16.msra.mxu0 0
    %845 = vmatprep.subr.bf16.mxu0 0
    %846 = vmatpush1.bf16.msra.mxu0 0
    %847 = vmatprep.subr.bf16.mxu0 0
    %848 = vmatpush1.bf16.msra.mxu0 0
    %849 = vmatprep.subr.bf16.mxu0 0
    %850 = vmatpush1.bf16.msra.mxu0 0
    %851 = vmatprep.subr.bf16.mxu0 0
    %852 = vmatpush1.bf16.msra.mxu0 0
    %853 = vmatprep.subr.bf16.mxu0 0
    %854 = vmatpush1.bf16.msra.mxu0 0
    %855 = vmatprep.subr.bf16.mxu0 0
    %856 = vmatpush1.bf16.msra.mxu0 0
    %857 = vmatprep.subr.bf16.mxu0 0
    %858 = vmatpush1.bf16.msra.mxu0 0
    %859 = vmatprep.subr.bf16.mxu0 0
    %860 = vmatpush1.bf16.msra.mxu0 0
    %861 = vmatprep.subr.bf16.mxu0 0
    %862 = vmatpush1.bf16.msra.mxu0 0
    %863 = vmatprep.subr.bf16.mxu0 0
    %864 = vmatpush1.bf16.msra.mxu0 0
    %865 = vmatprep.subr.bf16.mxu0 0
    %866 = vmatpush1.bf16.msra.mxu0 0
    %867 = vmatprep.subr.bf16.mxu0 0
    %868 = vmatpush1.bf16.msra.mxu0 0
    %869 = vmatprep.subr.bf16.mxu0 0
    %870 = vmatpush1.bf16.msra.mxu0 0
    %871 = vmatprep.mubr.bf16.mxu0 0
    %872 = vmatmul.mubr.bf16.gmra.mrb[0].mxu0 %v837
    %v873 = vpop.f32.mrb[0].mxu0
    %v874 = vadd.f32 %v818, %v873
    %v875 = vpop.f32.mrb[0].mxu0
    %v876 = vpop.f32.mrb[0].mxu0
    %v877 = vadd.f32 %v821, %v876
    %v878 = vpop.f32.mrb[0].mxu0
    %879 = vdwg.mxu0
    %v880 = vld [vmem:[#allocation17] sm:$0x1]
    %v882 = vlaneseq
    %v883 = vshrl.u32 %v882, 7
    %v884 = vsub.s32 0, %v883
    %v885 = vrot.slane %v880, %v884
    %v887 = vadd.f32 %v874, %v885
    %v888 = vadd.f32 %v877, %v885
    %v889 = vpack.c.bf16 %v888, %v887
    %890 = vmatprep.subr.bf16.mxu0 0
    %891 = vmatpush1.bf16.msra.mxu0 %v521
    %892 = vmatprep.subr.bf16.mxu0 0
    %893 = vmatpush1.bf16.msra.mxu0 0
    %894 = vmatprep.subr.bf16.mxu0 0
    %895 = vmatpush1.bf16.msra.mxu0 0
    %896 = vmatprep.subr.bf16.mxu0 0
    %897 = vmatpush1.bf16.msra.mxu0 0
    %898 = vmatprep.subr.bf16.mxu0 0
    %899 = vmatpush1.bf16.msra.mxu0 0
    %900 = vmatprep.subr.bf16.mxu0 0
    %901 = vmatpush1.bf16.msra.mxu0 0
    %902 = vmatprep.subr.bf16.mxu0 0
    %903 = vmatpush1.bf16.msra.mxu0 0
    %904 = vmatprep.subr.bf16.mxu0 0
    %905 = vmatpush1.bf16.msra.mxu0 0
    %906 = vmatprep.subr.bf16.mxu0 0
    %907 = vmatpush1.bf16.msra.mxu0 0
    %908 = vmatprep.subr.bf16.mxu0 0
    %909 = vmatpush1.bf16.msra.mxu0 0
    %910 = vmatprep.subr.bf16.mxu0 0
    %911 = vmatpush1.bf16.msra.mxu0 0
    %912 = vmatprep.subr.bf16.mxu0 0
    %913 = vmatpush1.bf16.msra.mxu0 0
    %914 = vmatprep.subr.bf16.mxu0 0
    %915 = vmatpush1.bf16.msra.mxu0 0
    %916 = vmatprep.subr.bf16.mxu0 0
    %917 = vmatpush1.bf16.msra.mxu0 0
    %918 = vmatprep.subr.bf16.mxu0 0
    %919 = vmatpush1.bf16.msra.mxu0 0
    %920 = vmatprep.subr.bf16.mxu0 0
    %921 = vmatpush1.bf16.msra.mxu0 0
    %922 = vmatprep.mubr.bf16.mxu0 0
    %923 = vmatmul.mubr.bf16.gmra.mrb[0].mxu0 %v528
    %v924 = vpop.f32.mrb[0].mxu0
    %v925 = vadd.f32 0.0, %v924
    %v926 = vpop.f32.mrb[0].mxu0
    %v927 = vpop.f32.mrb[0].mxu0
    %v928 = vadd.f32 0.0, %v927
    %v929 = vpop.f32.mrb[0].mxu0
    %930 = vdwg.mxu0
    %v931 = vmul.f32 %v925, %v574
    %v932 = vmul.f32 %v928, %v579
    %v933 = vpack.c.bf16 %v932, %v931
    %v934 = vld [vmem:[%s18] sm:$0xf]
    %v935 = vld [vmem:[%s18 + $0x4] sm:$0xf]
    %v936 = vld [vmem:[%s18 + $0x8] sm:$0xf]
    %v937 = vld [vmem:[%s18 + $0xc] sm:$0xf]
    %v938 = vld [vmem:[#allocation19] sm:$0xf]
    %v939 = vld [vmem:[#allocation19 + $0x4] sm:$0xf]
    %v940 = vld [vmem:[#allocation19 + $0x8] sm:$0xf]
    %v941 = vld [vmem:[#allocation19 + $0xc] sm:$0xf]
    %v946 = vunpack.c.l.b16 %v938
    %v947 = vunpack.c.l.b16 %v939
    %v948 = vunpack.c.l.b16 %v940
    %v949 = vunpack.c.l.b16 %v941
    %v950 = vpack.c.b16 %v947, %v946
    %v951 = vpack.c.b16 %v949, %v948
    %v955 = vsel %vm263, %v715, 0
    %957 = vmatprep.subr.bf16.mxu0 0
    %958 = vmatpush1.bf16.msra.mxu0 %v950
    %959 = vmatprep.subr.bf16.mxu0 0
    %960 = vmatpush1.bf16.msra.mxu0 %v951
    %961 = vmatprep.subr.bf16.mxu0 0
    %962 = vmatpush1.bf16.msra.mxu0 0
    %963 = vmatprep.subr.bf16.mxu0 0
    %964 = vmatpush1.bf16.msra.mxu0 0
    %965 = vmatprep.subr.bf16.mxu0 0
    %966 = vmatpush1.bf16.msra.mxu0 0
    %967 = vmatprep.subr.bf16.mxu0 0
    %968 = vmatpush1.bf16.msra.mxu0 0
    %969 = vmatprep.subr.bf16.mxu0 0
    %970 = vmatpush1.bf16.msra.mxu0 0
    %971 = vmatprep.subr.bf16.mxu0 0
    %972 = vmatpush1.bf16.msra.mxu0 0
    %973 = vmatprep.subr.bf16.mxu0 0
    %974 = vmatpush1.bf16.msra.mxu0 0
    %975 = vmatprep.subr.bf16.mxu0 0
    %976 = vmatpush1.bf16.msra.mxu0 0
    %977 = vmatprep.subr.bf16.mxu0 0
    %978 = vmatpush1.bf16.msra.mxu0 0
    %979 = vmatprep.subr.bf16.mxu0 0
    %980 = vmatpush1.bf16.msra.mxu0 0
    %981 = vmatprep.subr.bf16.mxu0 0
    %982 = vmatpush1.bf16.msra.mxu0 0
    %983 = vmatprep.subr.bf16.mxu0 0
    %984 = vmatpush1.bf16.msra.mxu0 0
    %985 = vmatprep.subr.bf16.mxu0 0
    %986 = vmatpush1.bf16.msra.mxu0 0
    %987 = vmatprep.subr.bf16.mxu0 0
    %988 = vmatpush1.bf16.msra.mxu0 0
    %989 = vmatprep.mubr.bf16.mxu0 0
    %990 = vmatmul.mubr.bf16.gmra.mrb[0].mxu0 %v955
    %v991 = vpop.f32.mrb[0].mxu0
    %v992 = vadd.f32 0.0, %v991
    %v993 = vpop.f32.mrb[0].mxu0
    %v994 = vpop.f32.mrb[0].mxu0
    %v995 = vadd.f32 0.0, %v994
    %v996 = vpop.f32.mrb[0].mxu0
    %997 = vdwg.mxu0
    %v1002 = vunpack.c.l.b16 %v934
    %v1003 = vunpack.c.l.b16 %v935
    %v1004 = vunpack.c.l.b16 %v936
    %v1005 = vunpack.c.l.b16 %v937
    %v1006 = vpack.c.b16 %v1003, %v1002
    %v1007 = vpack.c.b16 %v1005, %v1004
    %v1011 = vsel %vm263, %v933, 0
    %1013 = vmatprep.subr.bf16.mxu0 0
    %1014 = vmatpush1.bf16.msra.mxu0 %v1006
    %1015 = vmatprep.subr.bf16.mxu0 0
    %1016 = vmatpush1.bf16.msra.mxu0 %v1007
    %1017 = vmatprep.subr.bf16.mxu0 0
    %1018 = vmatpush1.bf16.msra.mxu0 0
    %1019 = vmatprep.subr.bf16.mxu0 0
    %1020 = vmatpush1.bf16.msra.mxu0 0
    %1021 = vmatprep.subr.bf16.mxu0 0
    %1022 = vmatpush1.bf16.msra.mxu0 0
    %1023 = vmatprep.subr.bf16.mxu0 0
    %1024 = vmatpush1.bf16.msra.mxu0 0
    %1025 = vmatprep.subr.bf16.mxu0 0
    %1026 = vmatpush1.bf16.msra.mxu0 0
    %1027 = vmatprep.subr.bf16.mxu0 0
    %1028 = vmatpush1.bf16.msra.mxu0 0
    %1029 = vmatprep.subr.bf16.mxu0 0
    %1030 = vmatpush1.bf16.msra.mxu0 0
    %1031 = vmatprep.subr.bf16.mxu0 0
    %1032 = vmatpush1.bf16.msra.mxu0 0
    %1033 = vmatprep.subr.bf16.mxu0 0
    %1034 = vmatpush1.bf16.msra.mxu0 0
    %1035 = vmatprep.subr.bf16.mxu0 0
    %1036 = vmatpush1.bf16.msra.mxu0 0
    %1037 = vmatprep.subr.bf16.mxu0 0
    %1038 = vmatpush1.bf16.msra.mxu0 0
    %1039 = vmatprep.subr.bf16.mxu0 0
    %1040 = vmatpush1.bf16.msra.mxu0 0
    %1041 = vmatprep.subr.bf16.mxu0 0
    %1042 = vmatpush1.bf16.msra.mxu0 0
    %1043 = vmatprep.subr.bf16.mxu0 0
    %1044 = vmatpush1.bf16.msra.mxu0 0
    %1045 = vmatprep.mubr.bf16.mxu0 0
    %1046 = vmatmul.mubr.bf16.gmra.mrb[0].mxu0 %v1011
    %v1047 = vpop.f32.mrb[0].mxu0
    %v1048 = vadd.f32 %v992, %v1047
    %v1049 = vpop.f32.mrb[0].mxu0
    %v1050 = vpop.f32.mrb[0].mxu0
    %v1051 = vadd.f32 %v995, %v1050
    %v1052 = vpop.f32.mrb[0].mxu0
    %1053 = vdwg.mxu0
    %v1054 = vld [vmem:[#allocation20] sm:$0x1]
    %v1056 = vlaneseq
    %v1057 = vshrl.u32 %v1056, 7
    %v1058 = vsub.s32 0, %v1057
    %v1059 = vrot.slane %v1054, %v1058
    %v1061 = vadd.f32 %v1048, %v1059
    %v1062 = vadd.f32 %v1051, %v1059
    %v1063 = vpack.c.bf16 %v1062, %v1061
    %v1064 = vld [vmem:[%s21] sm:$0xf]
    %v1065 = vld [vmem:[%s21 + $0x4] sm:$0xf]
    %1066 = vxpose.xlu0.c.b16.start [1/8] %v1063, 128
    %1067 = vxpose.xlu0.c.b16.cont [2/8] 0, 128
    %1068 = vxpose.xlu0.c.b16.cont [3/8] 0, 128
    %1069 = vxpose.xlu0.c.b16.cont [4/8] 0, 128
    %1070 = vxpose.xlu0.c.b16.cont [5/8] 0, 128
    %1071 = vxpose.xlu0.c.b16.cont [6/8] 0, 128
    %1072 = vxpose.xlu0.c.b16.cont [7/8] 0, 128
    %1073 = vxpose.xlu0.c.b16.end [8/8] 0, 128
    %v1074 = vpop.trf.xlu0
    %v1075 = vpop.trf.xlu0
    %v1076 = vpop.trf.xlu0
    %v1077 = vpop.trf.xlu0
    %v1078 = vpop.trf.xlu0
    %v1079 = vpop.trf.xlu0
    %v1080 = vpop.trf.xlu0
    %v1081 = vpop.trf.xlu0
    %v1084 = vunpack.c.l.b16 %v1064
    %v1085 = vunpack.c.l.b16 %v1065
    %v1086 = vpack.c.b16 %v1085, %v1084
    %v1089 = vsel %vm332, %v1074, 0
    %v1092 = vsel %vm332, %v1075, 0
    %1094 = vmatprep.subr.bf16.mxu0 0
    %1095 = vmatpush1.bf16.msra.mxu0 %v1086
    %1096 = vmatprep.subr.bf16.mxu0 0
    %1097 = vmatpush1.bf16.msra.mxu0 0
    %1098 = vmatprep.subr.bf16.mxu0 0
    %1099 = vmatpush1.bf16.msra.mxu0 0
    %1100 = vmatprep.subr.bf16.mxu0 0
    %1101 = vmatpush1.bf16.msra.mxu0 0
    %1102 = vmatprep.subr.bf16.mxu0 0
    %1103 = vmatpush1.bf16.msra.mxu0 0
    %1104 = vmatprep.subr.bf16.mxu0 0
    %1105 = vmatpush1.bf16.msra.mxu0 0
    %1106 = vmatprep.subr.bf16.mxu0 0
    %1107 = vmatpush1.bf16.msra.mxu0 0
    %1108 = vmatprep.subr.bf16.mxu0 0
    %1109 = vmatpush1.bf16.msra.mxu0 0
    %1110 = vmatprep.subr.bf16.mxu0 0
    %1111 = vmatpush1.bf16.msra.mxu0 0
    %1112 = vmatprep.subr.bf16.mxu0 0
    %1113 = vmatpush1.bf16.msra.mxu0 0
    %1114 = vmatprep.subr.bf16.mxu0 0
    %1115 = vmatpush1.bf16.msra.mxu0 0
    %1116 = vmatprep.subr.bf16.mxu0 0
    %1117 = vmatpush1.bf16.msra.mxu0 0
    %1118 = vmatprep.subr.bf16.mxu0 0
    %1119 = vmatpush1.bf16.msra.mxu0 0
    %1120 = vmatprep.subr.bf16.mxu0 0
    %1121 = vmatpush1.bf16.msra.mxu0 0
    %1122 = vmatprep.subr.bf16.mxu0 0
    %1123 = vmatpush1.bf16.msra.mxu0 0
    %1124 = vmatprep.subr.bf16.mxu0 0
    %1125 = vmatpush1.bf16.msra.mxu0 0
    %1126 = vmatprep.mubr.bf16.mxu0 0
    %1127 = vmatmul.mubr.bf16.gmra.mrb[0].mxu0 %v1089
    %v1128 = vpop.f32.mrb[0].mxu0
    %v1129 = vadd.f32 0.0, %v1128
    %v1130 = vpop.f32.mrb[0].mxu0
    %v1131 = vpop.f32.mrb[0].mxu0
    %v1132 = vadd.f32 0.0, %v1131
    %v1133 = vpop.f32.mrb[0].mxu0
    %1134 = vmatprep.mubr.bf16.mxu0 0
    %1135 = vmatmul.mubr.bf16.gmra.mrb[0].mxu0 %v1092
    %v1136 = vpop.f32.mrb[0].mxu0
    %v1137 = vadd.f32 0.0, %v1136
    %v1138 = vpop.f32.mrb[0].mxu0
    %v1139 = vpop.f32.mrb[0].mxu0
    %v1140 = vadd.f32 0.0, %v1139
    %v1141 = vpop.f32.mrb[0].mxu0
    %1142 = vdwg.mxu0
    %v1143 = vld [vmem:[%s22] sm:$0xf]
    %v1144 = vld [vmem:[%s22 + $0x4] sm:$0xf]
    %1145 = vxpose.xlu0.c.b16.start [1/8] %v889, 128
    %1146 = vxpose.xlu0.c.b16.cont [2/8] 0, 128
    %1147 = vxpose.xlu0.c.b16.cont [3/8] 0, 128
    %1148 = vxpose.xlu0.c.b16.cont [4/8] 0, 128
    %1149 = vxpose.xlu0.c.b16.cont [5/8] 0, 128
    %1150 = vxpose.xlu0.c.b16.cont [6/8] 0, 128
    %1151 = vxpose.xlu0.c.b16.cont [7/8] 0, 128
    %1152 = vxpose.xlu0.c.b16.end [8/8] 0, 128
    %v1153 = vpop.trf.xlu0
    %v1154 = vpop.trf.xlu0
    %v1155 = vpop.trf.xlu0
    %v1156 = vpop.trf.xlu0
    %v1157 = vpop.trf.xlu0
    %v1158 = vpop.trf.xlu0
    %v1159 = vpop.trf.xlu0
    %v1160 = vpop.trf.xlu0
    %v1163 = vunpack.c.l.b16 %v1143
    %v1164 = vunpack.c.l.b16 %v1144
    %v1165 = vpack.c.b16 %v1164, %v1163
    %v1168 = vsel %vm332, %v1153, 0
    %v1171 = vsel %vm332, %v1154, 0
    %1173 = vmatprep.subr.bf16.mxu0 0
    %1174 = vmatpush1.bf16.msra.mxu0 %v1165
    %1175 = vmatprep.subr.bf16.mxu0 0
    %1176 = vmatpush1.bf16.msra.mxu0 0
    %1177 = vmatprep.subr.bf16.mxu0 0
    %1178 = vmatpush1.bf16.msra.mxu0 0
    %1179 = vmatprep.subr.bf16.mxu0 0
    %1180 = vmatpush1.bf16.msra.mxu0 0
    %1181 = vmatprep.subr.bf16.mxu0 0
    %1182 = vmatpush1.bf16.msra.mxu0 0
    %1183 = vmatprep.subr.bf16.mxu0 0
    %1184 = vmatpush1.bf16.msra.mxu0 0
    %1185 = vmatprep.subr.bf16.mxu0 0
    %1186 = vmatpush1.bf16.msra.mxu0 0
    %1187 = vmatprep.subr.bf16.mxu0 0
    %1188 = vmatpush1.bf16.msra.mxu0 0
    %1189 = vmatprep.subr.bf16.mxu0 0
    %1190 = vmatpush1.bf16.msra.mxu0 0
    %1191 = vmatprep.subr.bf16.mxu0 0
    %1192 = vmatpush1.bf16.msra.mxu0 0
    %1193 = vmatprep.subr.bf16.mxu0 0
    %1194 = vmatpush1.bf16.msra.mxu0 0
    %1195 = vmatprep.subr.bf16.mxu0 0
    %1196 = vmatpush1.bf16.msra.mxu0 0
    %1197 = vmatprep.subr.bf16.mxu0 0
    %1198 = vmatpush1.bf16.msra.mxu0 0
    %1199 = vmatprep.subr.bf16.mxu0 0
    %1200 = vmatpush1.bf16.msra.mxu0 0
    %1201 = vmatprep.subr.bf16.mxu0 0
    %1202 = vmatpush1.bf16.msra.mxu0 0
    %1203 = vmatprep.subr.bf16.mxu0 0
    %1204 = vmatpush1.bf16.msra.mxu0 0
    %1205 = vmatprep.mubr.bf16.mxu0 0
    %1206 = vmatmul.mubr.bf16.gmra.mrb[0].mxu0 %v1168
    %v1207 = vpop.f32.mrb[0].mxu0
    %v1208 = vadd.f32 0.0, %v1207
    %v1209 = vpop.f32.mrb[0].mxu0
    %v1210 = vpop.f32.mrb[0].mxu0
    %v1211 = vadd.f32 0.0, %v1210
    %v1212 = vpop.f32.mrb[0].mxu0
    %1213 = vmatprep.mubr.bf16.mxu0 0
    %1214 = vmatmul.mubr.bf16.gmra.mrb[0].mxu0 %v1171
    %v1215 = vpop.f32.mrb[0].mxu0
    %v1216 = vadd.f32 0.0, %v1215
    %v1217 = vpop.f32.mrb[0].mxu0
    %v1218 = vpop.f32.mrb[0].mxu0
    %v1219 = vadd.f32 0.0, %v1218
    %v1220 = vpop.f32.mrb[0].mxu0
    %1221 = vdwg.mxu0
    %v1222 = vmul.f32 %v1129, %v1208
    %v1223 = vmul.f32 %v1132, %v1211
    %v1224 = vmul.f32 %v1137, %v1216
    %v1225 = vmul.f32 %v1140, %v1219
    %v1226 = vadd.f32 %v1222, %v1223
    %v1227 = vadd.f32 %v1226, %v1224
    %v1228 = vadd.f32 %v1227, %v1225
    %v1229 = vrot.slane %v1228, 4
    %v1230 = vadd.f32 %v1228, %v1229
    %v1231 = vrot.slane %v1230, 2
    %v1232 = vadd.f32 %v1230, %v1231
    %v1233 = vrot.slane %v1232, 1
    %v1234 = vadd.f32 %v1232, %v1233
    %1235 = vst [vmem:[#allocation22] sm:$0x1] %v1234
    // Predicated region
    $region142: #{tpu_custom_call.1} parent=1 // pred_check
      _
    $region143: #{tpu_custom_call.1} parent=1 // pred_check_branch
      %1237 = sbr.rel (0) target = $region145
    $region144: #{tpu_custom_call.1} parent=1 // pred_region
      %s1239 = ssub.s32 16, 16
      %1240 = vsyncadd [#allocation4], %s1239
      %s1242 = sshll.u32 [#allocation22], 4
      %s1243 = int_to_ptr.vmem [resolvable:$true] %s1242
      %1245 = dma.vmem_to_hbm [thread:$0]  %s1243, 16, %s23, [#allocation4]
    $region145: #{tpu_custom_call.1} parent=1 // pred_fallthru
      _
    // Predicated region
    $region146: #{tpu_custom_call.1} parent=1 // pred_check
      _
    $region147: #{tpu_custom_call.1} parent=1 // pred_check_branch
      %1247 = sbr.rel (0) target = $region149
    $region148: #{tpu_custom_call.1} parent=1 // pred_region
      %1248 = dma.done [#allocation4], 16
    $region149: #{tpu_custom_call.1} parent=1 // pred_fallthru
      _
    %1249 = vsyncpa [#allocation3], 1
    %1250 = vsyncpa [#allocation6], 1
    %1251 = vsyncpa [#allocation9], 1
    %1252 = vsyncpa [#allocation12], 1
    %1253 = vsyncpa [#allocation15], 1
    %1254 = vsyncpa [#allocation18], 1
    %1255 = vsyncpa [#allocation21], 1
    %1256 = vsyncpa [#allocation4], 1

</llo_original>
